<compile_context>
chip_gen: v7x
topology: tpu7x:2x2x1
jax: 0.10.0
libtpu: 0.0.40
codegen_flags: <defaults>
</compile_context>

<pallas_src>
import jax
import jax.numpy as jnp
from jax import lax
from jax.experimental import pallas as pl
from jax.experimental.pallas import tpu as pltpu

_HIGHEST = jax.lax.Precision.HIGHEST


def _branch(idx, rw, table, w):
    """Gather rows of `table` at `idx` (one-hot MXU gather, exact with HIGHEST
    precision), compute the nn.Embedding(max_norm=1) renorm factor, optionally
    apply the bias-free Linear, then apply ONE fused per-row factor
    (renorm_scale * row_weight). Exact by linearity of the matmul."""
    n = idx.shape[0]
    node_num = table.shape[0]

    # In-kernel gather as a one-hot matmul (runs on the MXU).
    cols = lax.broadcasted_iota(jnp.int32, (n, node_num), 1)
    onehot = (cols == idx).astype(jnp.float32)                          # (n, node_num)
    x = jnp.dot(onehot, table,
                preferred_element_type=jnp.float32,
                precision=_HIGHEST)                                     # (n, D_in)

    # max_norm=1: rows whose L2 norm exceeds 1 are scaled by 1/(norm + 1e-7).
    norm = jnp.sqrt(jnp.sum(x * x, axis=-1, keepdims=True))             # (n, 1)
    renorm = jnp.where(norm > 1.0, 1.0 / (norm + 1e-7), 1.0)
    factor = renorm * rw                                                # (n, 1)

    if w is None:
        return x * factor
    y = jnp.dot(x, w,
                preferred_element_type=jnp.float32,
                precision=_HIGHEST)                                     # (n, D_out)
    return y * factor


def _fused_kernel_aug(s_idx_ref, t_idx_ref, s_rw_ref, t_rw_ref, emb_ref, w_ref,
                      s_out_ref, t_out_ref):
    """augmentation=True: gather -> renorm -> Linear (no bias) -> row scale,
    both branches in one kernel, two outputs."""
    table = emb_ref[...].astype(jnp.float32)
    w = w_ref[...].astype(jnp.float32)
    s_out_ref[...] = _branch(s_idx_ref[...], s_rw_ref[...], table, w
                             ).astype(s_out_ref.dtype)
    t_out_ref[...] = _branch(t_idx_ref[...], t_rw_ref[...], table, w
                             ).astype(t_out_ref.dtype)


def _fused_kernel_noaug(s_idx_ref, t_idx_ref, s_rw_ref, t_rw_ref, emb_ref,
                        s_out_ref, t_out_ref):
    """augmentation=False: gather -> renorm -> row scale (no Linear weight DMA)."""
    table = emb_ref[...].astype(jnp.float32)
    s_out_ref[...] = _branch(s_idx_ref[...], s_rw_ref[...], table, None
                             ).astype(s_out_ref.dtype)
    t_out_ref[...] = _branch(t_idx_ref[...], t_rw_ref[...], table, None
                             ).astype(t_out_ref.dtype)


def linear_trans_forward(params, S_in, T_in, anc, s_weight, t_weight,
                         *, augmentation=True):
    """Mirrors Linear_trans.forward. `anc` is unused by the torch forward too."""
    del anc
    emb = params["emb"].astype(jnp.float32)        # [node_num, D_in]
    node_num, d_in = emb.shape
    n_s, n_t = S_in.shape[0], T_in.shape[0]

    # (n,) -> (n, 1): cheap layout-only reshapes; the one-hot compare and the
    # per-row factor both need a sublane-resident column vector in-kernel.
    s_idx = S_in.astype(jnp.int32)[:, None]
    t_idx = T_in.astype(jnp.int32)[:, None]
    s_rw = s_weight.astype(jnp.float32)[:, None]
    t_rw = t_weight.astype(jnp.float32)[:, None]

    def vmem():
        return pl.BlockSpec(memory_space=pltpu.MemorySpace.VMEM)

    if augmentation:
        w = params["w"].astype(jnp.float32)        # [D_in, D_out] (= torch L1.weight.T)
        d_out = w.shape[1]
        kernel = _fused_kernel_aug
        inputs = (s_idx, t_idx, s_rw, t_rw, emb, w)
    else:
        d_out = d_in
        kernel = _fused_kernel_noaug
        inputs = (s_idx, t_idx, s_rw, t_rw, emb)

    s_out, t_out = pl.pallas_call(
        kernel,
        out_shape=(jax.ShapeDtypeStruct((n_s, d_out), jnp.float32),
                   jax.ShapeDtypeStruct((n_t, d_out), jnp.float32)),
        in_specs=[vmem() for _ in inputs],
        out_specs=(vmem(), vmem()),
    )(*inputs)

    return s_out, t_out


def _xavier_uniform(key, shape, gain=1.0):
    fan_in, fan_out = shape[0], shape[1]
    bound = gain * jnp.sqrt(6.0 / (fan_in + fan_out))
    return jax.random.uniform(key, shape, jnp.float32, -bound, bound)


def _reference_forward(params, S_in, T_in, s_weight, t_weight, augmentation=True):
    def branch(idx, rowscale):
        x = jnp.take(params["emb"], idx, axis=0)
        n = jnp.sqrt(jnp.sum(x * x, axis=-1, keepdims=True))
        x = x * jnp.where(n > 1.0, 1.0 / (n + 1e-7), 1.0)
        y = x @ params["w"] if augmentation else x
        return y * rowscale[:, None]
    return branch(S_in, s_weight), branch(T_in, t_weight)


if __name__ == "__main__":
    # opt: node_num_1=32, node_num_2=32, input_dim=32, output_dim=32,
    #      init='x_u', gain=1.0, augmentation='T', pretrained_embedding='F'
    node_num = 32 + 32
    input_dim = 32
    output_dim = 32
    n_s = 16
    n_t = 16

    key = jax.random.PRNGKey(0)
    k_emb, k_w, k_s, k_t, k_sw, k_tw = jax.random.split(key, 6)

    params = {
        # Eemb.weight: [node_num, input_dim], xavier_uniform
        "emb": _xavier_uniform(k_emb, (node_num, input_dim)),
        # L1.weight in torch is [output_dim, input_dim]; we store its transpose.
        "w": _xavier_uniform(k_w, (output_dim, input_dim), gain=1.0).T,
    }

    S_in = jax.random.randint(k_s, (n_s,), 0, node_num, dtype=jnp.int32)
    T_in = jax.random.randint(k_t, (n_t,), 0, node_num, dtype=jnp.int32)
    anc = jnp.arange(4, dtype=jnp.int32)  # unused by forward, kept for signature parity
    s_weight = jax.random.uniform(k_sw, (n_s,), jnp.float32)
    t_weight = jax.random.uniform(k_tw, (n_t,), jnp.float32)

    # augmentation=True
    S_out, T_out = linear_trans_forward(params, S_in, T_in, anc, s_weight, t_weight,
                                        augmentation=True)
    jax.block_until_ready((S_out, T_out))

    S_ref, T_ref = _reference_forward(params, S_in, T_in, s_weight, t_weight, True)
    assert S_out.shape == (n_s, output_dim) and T_out.shape == (n_t, output_dim)
    assert jnp.allclose(S_out, S_ref, atol=1e-5, rtol=1e-5)
    assert jnp.allclose(T_out, T_ref, atol=1e-5, rtol=1e-5)

    # augmentation=False
    S_out2, T_out2 = linear_trans_forward(params, S_in, T_in, anc, s_weight, t_weight,
                                          augmentation=False)
    jax.block_until_ready((S_out2, T_out2))
    S_ref2, T_ref2 = _reference_forward(params, S_in, T_in, s_weight, t_weight, False)
    assert jnp.allclose(S_out2, S_ref2, atol=1e-5, rtol=1e-5)
    assert jnp.allclose(T_out2, T_ref2, atol=1e-5, rtol=1e-5)

    print("KERNEL_OK")
</pallas_src>

<mosaic_0001>
module attributes {stable_mosaic.version = 11 : i64} {
  func.func @_fused_kernel_aug(%arg0: memref<16x1xi32, #tpu.memory_space<vmem>>, %arg1: memref<16x1xi32, #tpu.memory_space<vmem>>, %arg2: memref<16x1xf32, #tpu.memory_space<vmem>>, %arg3: memref<16x1xf32, #tpu.memory_space<vmem>>, %arg4: memref<64x32xf32, #tpu.memory_space<vmem>>, %arg5: memref<32x32xf32, #tpu.memory_space<vmem>>, %arg6: memref<16x32xf32, #tpu.memory_space<vmem>>, %arg7: memref<16x32xf32, #tpu.memory_space<vmem>>) attributes {dimension_semantics = [], scalar_prefetch = 0 : i64, scratch_operands = 0 : i64, tpu.core_type = #tpu.core_type<tc>} {
    %c0 = arith.constant 0 : index
    %c0_0 = arith.constant 0 : index
    %0 = vector.load %arg4[%c0, %c0_0] : memref<64x32xf32, #tpu.memory_space<vmem>>, vector<64x32xf32>
    %c0_1 = arith.constant 0 : index
    %c0_2 = arith.constant 0 : index
    %1 = vector.load %arg5[%c0_1, %c0_2] : memref<32x32xf32, #tpu.memory_space<vmem>>, vector<32x32xf32>
    %c0_3 = arith.constant 0 : index
    %c0_4 = arith.constant 0 : index
    %2 = vector.load %arg0[%c0_3, %c0_4] : memref<16x1xi32, #tpu.memory_space<vmem>>, vector<16x1xi32>
    %c0_5 = arith.constant 0 : index
    %c0_6 = arith.constant 0 : index
    %3 = vector.load %arg2[%c0_5, %c0_6] : memref<16x1xf32, #tpu.memory_space<vmem>>, vector<16x1xf32>
    %4 = tpu.iota {dimensions = array<i32: 1>} : vector<16x64xi32>
    %5 = vector.broadcast %2 : vector<16x1xi32> to vector<16x64xi32>
    %6 = arith.cmpi eq, %4, %5 : vector<16x64xi32>
    %7 = arith.extui %6 : vector<16x64xi1> to vector<16x64xi32>
    %8 = arith.sitofp %7 : vector<16x64xi32> to vector<16x64xf32>
    %cst = arith.constant dense<0.000000e+00> : vector<16x32xf32>
    %9 = tpu.matmul %8, %0, %cst {dimension_numbers = #tpu.dot_dimension_numbers<[1], [0], [0], [1], [0, 0, 1, 1], [], []>, precision = #tpu.contract_precision<fp32>} : vector<16x64xf32>, vector<64x32xf32>, vector<16x32xf32> -> vector<16x32xf32>
    %10 = arith.mulf %9, %9 : vector<16x32xf32>
    %cst_7 = arith.constant dense<0.000000e+00> : vector<16xf32>
    %11 = vector.multi_reduction <add>, %10, %cst_7 [1] : vector<16x32xf32> to vector<16xf32>
    %12 = vector.shape_cast %11 : vector<16xf32> to vector<16x1xf32>
    %13 = math.sqrt %12 : vector<16x1xf32>
    %cst_8 = arith.constant 1.000000e+00 : f32
    %14 = vector.broadcast %cst_8 : f32 to vector<16x1xf32>
    %15 = arith.cmpf ogt, %13, %14 : vector<16x1xf32>
    %cst_9 = arith.constant 1.000000e-07 : f32
    %16 = vector.broadcast %cst_9 : f32 to vector<16x1xf32>
    %17 = arith.addf %13, %16 : vector<16x1xf32>
    %cst_10 = arith.constant 1.000000e+00 : f32
    %18 = vector.broadcast %cst_10 : f32 to vector<16x1xf32>
    %19 = arith.divf %18, %17 : vector<16x1xf32>
    %cst_11 = arith.constant 1.000000e+00 : f32
    %20 = vector.broadcast %cst_11 : f32 to vector<16x1xf32>
    %21 = arith.select %15, %19, %20 : vector<16x1xi1>, vector<16x1xf32>
    %22 = arith.mulf %21, %3 : vector<16x1xf32>
    %cst_12 = arith.constant dense<0.000000e+00> : vector<16x32xf32>
    %23 = tpu.matmul %9, %1, %cst_12 {dimension_numbers = #tpu.dot_dimension_numbers<[1], [0], [0], [1], [0, 0, 1, 1], [], []>, precision = #tpu.contract_precision<fp32>} : vector<16x32xf32>, vector<32x32xf32>, vector<16x32xf32> -> vector<16x32xf32>
    %24 = vector.broadcast %22 : vector<16x1xf32> to vector<16x32xf32>
    %25 = arith.mulf %23, %24 : vector<16x32xf32>
    %c0_13 = arith.constant 0 : index
    %c0_14 = arith.constant 0 : index
    %26 = vector.load %arg6[%c0_13, %c0_14] : memref<16x32xf32, #tpu.memory_space<vmem>>, vector<16x32xf32>
    tpu.vector_store %arg6[%c0_13, %c0_14], %25 {strides = array<i32>} : memref<16x32xf32, #tpu.memory_space<vmem>>, vector<16x32xf32>,
    %c0_15 = arith.constant 0 : index
    %c0_16 = arith.constant 0 : index
    %27 = vector.load %arg1[%c0_15, %c0_16] : memref<16x1xi32, #tpu.memory_space<vmem>>, vector<16x1xi32>
    %c0_17 = arith.constant 0 : index
    %c0_18 = arith.constant 0 : index
    %28 = vector.load %arg3[%c0_17, %c0_18] : memref<16x1xf32, #tpu.memory_space<vmem>>, vector<16x1xf32>
    %29 = tpu.iota {dimensions = array<i32: 1>} : vector<16x64xi32>
    %30 = vector.broadcast %27 : vector<16x1xi32> to vector<16x64xi32>
    %31 = arith.cmpi eq, %29, %30 : vector<16x64xi32>
    %32 = arith.extui %31 : vector<16x64xi1> to vector<16x64xi32>
    %33 = arith.sitofp %32 : vector<16x64xi32> to vector<16x64xf32>
    %cst_19 = arith.constant dense<0.000000e+00> : vector<16x32xf32>
    %34 = tpu.matmul %33, %0, %cst_19 {dimension_numbers = #tpu.dot_dimension_numbers<[1], [0], [0], [1], [0, 0, 1, 1], [], []>, precision = #tpu.contract_precision<fp32>} : vector<16x64xf32>, vector<64x32xf32>, vector<16x32xf32> -> vector<16x32xf32>
    %35 = arith.mulf %34, %34 : vector<16x32xf32>
    %cst_20 = arith.constant dense<0.000000e+00> : vector<16xf32>
    %36 = vector.multi_reduction <add>, %35, %cst_20 [1] : vector<16x32xf32> to vector<16xf32>
    %37 = vector.shape_cast %36 : vector<16xf32> to vector<16x1xf32>
    %38 = math.sqrt %37 : vector<16x1xf32>
    %cst_21 = arith.constant 1.000000e+00 : f32
    %39 = vector.broadcast %cst_21 : f32 to vector<16x1xf32>
    %40 = arith.cmpf ogt, %38, %39 : vector<16x1xf32>
    %cst_22 = arith.constant 1.000000e-07 : f32
    %41 = vector.broadcast %cst_22 : f32 to vector<16x1xf32>
    %42 = arith.addf %38, %41 : vector<16x1xf32>
    %cst_23 = arith.constant 1.000000e+00 : f32
    %43 = vector.broadcast %cst_23 : f32 to vector<16x1xf32>
    %44 = arith.divf %43, %42 : vector<16x1xf32>
    %cst_24 = arith.constant 1.000000e+00 : f32
    %45 = vector.broadcast %cst_24 : f32 to vector<16x1xf32>
    %46 = arith.select %40, %44, %45 : vector<16x1xi1>, vector<16x1xf32>
    %47 = arith.mulf %46, %28 : vector<16x1xf32>
    %cst_25 = arith.constant dense<0.000000e+00> : vector<16x32xf32>
    %48 = tpu.matmul %34, %1, %cst_25 {dimension_numbers = #tpu.dot_dimension_numbers<[1], [0], [0], [1], [0, 0, 1, 1], [], []>, precision = #tpu.contract_precision<fp32>} : vector<16x32xf32>, vector<32x32xf32>, vector<16x32xf32> -> vector<16x32xf32>
    %49 = vector.broadcast %47 : vector<16x1xf32> to vector<16x32xf32>
    %50 = arith.mulf %48, %49 : vector<16x32xf32>
    %c0_26 = arith.constant 0 : index
    %c0_27 = arith.constant 0 : index
    %51 = vector.load %arg7[%c0_26, %c0_27] : memref<16x32xf32, #tpu.memory_space<vmem>>, vector<16x32xf32>
    tpu.vector_store %arg7[%c0_26, %c0_27], %50 {strides = array<i32>} : memref<16x32xf32, #tpu.memory_space<vmem>>, vector<16x32xf32>,
    return
  }
}

</mosaic_0001>

<llo_original>
// kernel: tpu_custom_call.1
$region0: #{tpu_custom_call.1}
  #allocation0 [shape = 'u32[]', space=smem, size = 0x4, offset = 0x4, fixed_abs, tag = 'smem constant byte address 0x4 - core index']
  #allocation1 [shape = 'u32[144,128]{1,0:T(1,128)}', space=vmem, size = 0x12000, scoped, tag = 'internal scratch']
  %s0 = inlined_call_operand.vmem [shape: s32[16,1], index: 0, kind: input, shape index: {}]
  %s1 = inlined_call_operand.vmem [shape: s32[16,1], index: 1, kind: input, shape index: {}]
  %s2 = inlined_call_operand.vmem [shape: f32[16,1], index: 2, kind: input, shape index: {}]
  %s3 = inlined_call_operand.vmem [shape: f32[16,1], index: 3, kind: input, shape index: {}]
  %s4 = inlined_call_operand.vmem [shape: f32[64,32], index: 4, kind: input, shape index: {}]
  %s5 = inlined_call_operand.vmem [shape: f32[32,32], index: 5, kind: input, shape index: {}]
  %s6 = inlined_call_operand.hbm [shape: f32[16,32], index: 6, kind: output, shape index: {0}]
  %s7 = inlined_call_operand.hbm [shape: f32[16,32], index: 7, kind: output, shape index: {1}]
  %8 = xla_tuple %s6, %s7
  %s9 = sld [smem:[#allocation0]]
  $region42: #{tpu_custom_call.1} parent=0
    _
  %s11 = ssub.s32 1, %s9
  %s12 = scalar_select 0, %s11, %s9
  $region1: #{tpu_custom_call.1} parent=0
    #allocation2 [shape = 'u8[8192]{0}', space=vmem, size = 0x2000, scoped, tag = 'output window, operand 0, single buffered']
    #allocation3 [shape = 's32[1]{0}', space=sflag, size = 0x4, scoped, tag = 'scoped memory for tpu_custom_call.1']
    #allocation4 [shape = 'u8[8192]{0}', space=vmem, size = 0x2000, scoped, tag = 'output window, operand 1, single buffered']
    #allocation5 [shape = 's32[1]{0}', space=sflag, size = 0x4, scoped, tag = 'scoped memory for tpu_custom_call.1']
    %13 = vsyncpa [#allocation3], 0
    %14 = vsyncpa [#allocation5], 0
    // Predicated region
    $region2: #{tpu_custom_call.1} parent=1 // pred_check
      _
    $region3: #{tpu_custom_call.1} parent=1 // pred_check_branch
      %16 = sbr.rel (0) target = $region5
    $region4: #{tpu_custom_call.1} parent=1 // pred_region
      _
    $region5: #{tpu_custom_call.1} parent=1 // pred_fallthru
      _
    // Predicated region
    $region6: #{tpu_custom_call.1} parent=1 // pred_check
      _
    $region7: #{tpu_custom_call.1} parent=1 // pred_check_branch
      %18 = sbr.rel (0) target = $region9
    $region8: #{tpu_custom_call.1} parent=1 // pred_region
      _
    $region9: #{tpu_custom_call.1} parent=1 // pred_fallthru
      _
    // Predicated region
    $region10: #{tpu_custom_call.1} parent=1 // pred_check
      _
    $region11: #{tpu_custom_call.1} parent=1 // pred_check_branch
      %20 = sbr.rel (0) target = $region13
    $region12: #{tpu_custom_call.1} parent=1 // pred_region
      _
    $region13: #{tpu_custom_call.1} parent=1 // pred_fallthru
      _
    // Predicated region
    $region14: #{tpu_custom_call.1} parent=1 // pred_check
      _
    $region15: #{tpu_custom_call.1} parent=1 // pred_check_branch
      %22 = sbr.rel (0) target = $region17
    $region16: #{tpu_custom_call.1} parent=1 // pred_region
      _
    $region17: #{tpu_custom_call.1} parent=1 // pred_fallthru
      _
    // Predicated region
    $region18: #{tpu_custom_call.1} parent=1 // pred_check
      _
    $region19: #{tpu_custom_call.1} parent=1 // pred_check_branch
      %24 = sbr.rel (0) target = $region21
    $region20: #{tpu_custom_call.1} parent=1 // pred_region
      _
    $region21: #{tpu_custom_call.1} parent=1 // pred_fallthru
      _
    // Predicated region
    $region22: #{tpu_custom_call.1} parent=1 // pred_check
      _
    $region23: #{tpu_custom_call.1} parent=1 // pred_check_branch
      %26 = sbr.rel (0) target = $region25
    $region24: #{tpu_custom_call.1} parent=1 // pred_region
      _
    $region25: #{tpu_custom_call.1} parent=1 // pred_fallthru
      _
    %v27 = vld [vmem:[%s4] sm:$0xff]
    %v28 = vld [vmem:[%s4 + $0x8] sm:$0xff]
    %v29 = vld [vmem:[%s4 + $0x10] sm:$0xff]
    %v30 = vld [vmem:[%s4 + $0x18] sm:$0xff]
    %v31 = vld [vmem:[%s4 + $0x20] sm:$0xff]
    %v32 = vld [vmem:[%s4 + $0x28] sm:$0xff]
    %v33 = vld [vmem:[%s4 + $0x30] sm:$0xff]
    %v34 = vld [vmem:[%s4 + $0x38] sm:$0xff]
    %v35 = vld [vmem:[%s5] sm:$0xff]
    %v36 = vld [vmem:[%s5 + $0x8] sm:$0xff]
    %v37 = vld [vmem:[%s5 + $0x10] sm:$0xff]
    %v38 = vld [vmem:[%s5 + $0x18] sm:$0xff]
    %v39 = vld [vmem:[%s0] sm:$0xff]
    %v40 = vld [vmem:[%s0 + $0x8] sm:$0xff]
    %v41 = vld [vmem:[%s2] sm:$0xff]
    %v42 = vld [vmem:[%s2 + $0x8] sm:$0xff]
    %v43 = vlaneseq
    %v44 = vand.u32 %v43, 127
    %45 = vset.pattern.permute.xlu0 0
    %46 = vperm.xlu0 %45, %v39
    %v47 = vpop.permute.xlu0 %46
    %48 = vset.pattern.permute.xlu0 0
    %49 = vperm.xlu0 %48, %v40
    %v50 = vpop.permute.xlu0 %49
    %vm51 = vcmp.eq.s32.totalorder %v44, %v47
    %vm52 = vcmp.eq.s32.totalorder %v44, %v50
    %v53 = vsel %vm51, 1, 0
    %v54 = vsel %vm52, 1, 0
    %v55 = vcvt.s32.f32 %v53
    %v56 = vcvt.s32.f32 %v54
    %vm57 = vcmask 523264
    %v59 = vsel %vm57, %v55, 0
    %v62 = vsel %vm57, %v56, 0
    %64 = vmatprep.subr.mxu0 0.0
    %v65 = vand.u32 %v27, 4294901760
    %66 = vmatpush1.msra.mxu0 %v65
    %67 = vmatprep.subr.mxu0 0.0
    %v68 = vand.u32 %v28, 4294901760
    %69 = vmatpush1.msra.mxu0 %v68
    %70 = vmatprep.subr.mxu0 0.0
    %v71 = vand.u32 %v29, 4294901760
    %72 = vmatpush1.msra.mxu0 %v71
    %73 = vmatprep.subr.mxu0 0.0
    %v74 = vand.u32 %v30, 4294901760
    %75 = vmatpush1.msra.mxu0 %v74
    %76 = vmatprep.subr.mxu0 0.0
    %v77 = vand.u32 %v31, 4294901760
    %78 = vmatpush1.msra.mxu0 %v77
    %79 = vmatprep.subr.mxu0 0.0
    %v80 = vand.u32 %v32, 4294901760
    %81 = vmatpush1.msra.mxu0 %v80
    %82 = vmatprep.subr.mxu0 0.0
    %v83 = vand.u32 %v33, 4294901760
    %84 = vmatpush1.msra.mxu0 %v83
    %85 = vmatprep.subr.mxu0 0.0
    %v86 = vand.u32 %v34, 4294901760
    %87 = vmatpush1.msra.mxu0 %v86
    %88 = vmatprep.subr.mxu0 0.0
    %89 = vmatpush1.msra.mxu0 0.0
    %90 = vmatprep.subr.mxu0 0.0
    %91 = vmatpush1.msra.mxu0 0.0
    %92 = vmatprep.subr.mxu0 0.0
    %93 = vmatpush1.msra.mxu0 0.0
    %94 = vmatprep.subr.mxu0 0.0
    %95 = vmatpush1.msra.mxu0 0.0
    %96 = vmatprep.subr.mxu0 0.0
    %97 = vmatpush1.msra.mxu0 0.0
    %98 = vmatprep.subr.mxu0 0.0
    %99 = vmatpush1.msra.mxu0 0.0
    %100 = vmatprep.subr.mxu0 0.0
    %101 = vmatpush1.msra.mxu0 0.0
    %102 = vmatprep.subr.mxu0 0.0
    %103 = vmatpush1.msra.mxu0 0.0
    %104 = vmatprep.subr.mxu0 0.0
    %105 = vmatpush1.msra.mxu0 0.0
    %106 = vmatprep.subr.mxu0 0.0
    %107 = vmatpush1.msra.mxu0 0.0
    %108 = vmatprep.subr.mxu0 0.0
    %109 = vmatpush1.msra.mxu0 0.0
    %110 = vmatprep.subr.mxu0 0.0
    %111 = vmatpush1.msra.mxu0 0.0
    %112 = vmatprep.subr.mxu0 0.0
    %113 = vmatpush1.msra.mxu0 0.0
    %114 = vmatprep.subr.mxu0 0.0
    %115 = vmatpush1.msra.mxu0 0.0
    %116 = vmatprep.subr.mxu0 0.0
    %117 = vmatpush1.msra.mxu0 0.0
    %118 = vmatprep.subr.mxu0 0.0
    %119 = vmatpush1.msra.mxu0 0.0
    %120 = vmatprep.subr.mxu0 0.0
    %121 = vmatpush1.msra.mxu0 0.0
    %122 = vmatprep.subr.mxu0 0.0
    %123 = vmatpush1.msra.mxu0 0.0
    %124 = vmatprep.subr.mxu0 0.0
    %125 = vmatpush1.msra.mxu0 0.0
    %126 = vmatprep.subr.mxu0 0.0
    %127 = vmatpush1.msra.mxu0 0.0
    %128 = vmatprep.subr.mxu0 0.0
    %129 = vmatpush1.msra.mxu0 0.0
    %130 = vmatprep.subr.mxu0 0.0
    %131 = vmatpush1.msra.mxu0 0.0
    %132 = vmatprep.subr.mxu0 0.0
    %133 = vmatpush1.msra.mxu0 0.0
    %134 = vmatprep.subr.mxu0 0.0
    %135 = vmatpush1.msra.mxu0 0.0
    %136 = vmatprep.mubr.f32.mxu0 0.0
    %v137 = vand.u32 %v59, 4294901760
    %v138 = vsub.f32 %v59, %v137
    %v139 = vand.u32 %v138, 4294901760
    %v140 = vsub.f32 %v138, %v139
    %v141 = vand.u32 %v140, 4294901760
    %142 = vmatmul.mubr.f32.gmra.mrb[0].mxu0 %v141
    %v143 = vpop.f32.mrb[0].mxu0
    %v144 = vadd.f32 0.0, %v143
    %v145 = vpop.f32.mrb[0].mxu0
    %146 = vmatprep.mubr.f32.mxu0 0.0
    %v147 = vand.u32 %v62, 4294901760
    %v148 = vsub.f32 %v62, %v147
    %v149 = vand.u32 %v148, 4294901760
    %v150 = vsub.f32 %v148, %v149
    %v151 = vand.u32 %v150, 4294901760
    %152 = vmatmul.mubr.f32.gmra.mrb[0].mxu0 %v151
    %v153 = vpop.f32.mrb[0].mxu0
    %v154 = vadd.f32 0.0, %v153
    %v155 = vpop.f32.mrb[0].mxu0
    %156 = vdwg.mxu0
    %157 = vmatprep.subr.mxu0 0.0
    %v158 = vand.u32 %v27, 4294901760
    %v159 = vsub.f32 %v27, %v158
    %v160 = vand.u32 %v159, 4294901760
    %v161 = vsub.f32 %v159, %v160
    %v162 = vand.u32 %v161, 4294901760
    %163 = vmatpush1.msra.mxu0 %v162
    %164 = vmatprep.subr.mxu0 0.0
    %v165 = vand.u32 %v28, 4294901760
    %v166 = vsub.f32 %v28, %v165
    %v167 = vand.u32 %v166, 4294901760
    %v168 = vsub.f32 %v166, %v167
    %v169 = vand.u32 %v168, 4294901760
    %170 = vmatpush1.msra.mxu0 %v169
    %171 = vmatprep.subr.mxu0 0.0
    %v172 = vand.u32 %v29, 4294901760
    %v173 = vsub.f32 %v29, %v172
    %v174 = vand.u32 %v173, 4294901760
    %v175 = vsub.f32 %v173, %v174
    %v176 = vand.u32 %v175, 4294901760
    %177 = vmatpush1.msra.mxu0 %v176
    %178 = vmatprep.subr.mxu0 0.0
    %v179 = vand.u32 %v30, 4294901760
    %v180 = vsub.f32 %v30, %v179
    %v181 = vand.u32 %v180, 4294901760
    %v182 = vsub.f32 %v180, %v181
    %v183 = vand.u32 %v182, 4294901760
    %184 = vmatpush1.msra.mxu0 %v183
    %185 = vmatprep.subr.mxu0 0.0
    %v186 = vand.u32 %v31, 4294901760
    %v187 = vsub.f32 %v31, %v186
    %v188 = vand.u32 %v187, 4294901760
    %v189 = vsub.f32 %v187, %v188
    %v190 = vand.u32 %v189, 4294901760
    %191 = vmatpush1.msra.mxu0 %v190
    %192 = vmatprep.subr.mxu0 0.0
    %v193 = vand.u32 %v32, 4294901760
    %v194 = vsub.f32 %v32, %v193
    %v195 = vand.u32 %v194, 4294901760
    %v196 = vsub.f32 %v194, %v195
    %v197 = vand.u32 %v196, 4294901760
    %198 = vmatpush1.msra.mxu0 %v197
    %199 = vmatprep.subr.mxu0 0.0
    %v200 = vand.u32 %v33, 4294901760
    %v201 = vsub.f32 %v33, %v200
    %v202 = vand.u32 %v201, 4294901760
    %v203 = vsub.f32 %v201, %v202
    %v204 = vand.u32 %v203, 4294901760
    %205 = vmatpush1.msra.mxu0 %v204
    %206 = vmatprep.subr.mxu0 0.0
    %v207 = vand.u32 %v34, 4294901760
    %v208 = vsub.f32 %v34, %v207
    %v209 = vand.u32 %v208, 4294901760
    %v210 = vsub.f32 %v208, %v209
    %v211 = vand.u32 %v210, 4294901760
    %212 = vmatpush1.msra.mxu0 %v211
    %213 = vmatprep.subr.mxu0 0.0
    %214 = vmatpush1.msra.mxu0 0.0
    %215 = vmatprep.subr.mxu0 0.0
    %216 = vmatpush1.msra.mxu0 0.0
    %217 = vmatprep.subr.mxu0 0.0
    %218 = vmatpush1.msra.mxu0 0.0
    %219 = vmatprep.subr.mxu0 0.0
    %220 = vmatpush1.msra.mxu0 0.0
    %221 = vmatprep.subr.mxu0 0.0
    %222 = vmatpush1.msra.mxu0 0.0
    %223 = vmatprep.subr.mxu0 0.0
    %224 = vmatpush1.msra.mxu0 0.0
    %225 = vmatprep.subr.mxu0 0.0
    %226 = vmatpush1.msra.mxu0 0.0
    %227 = vmatprep.subr.mxu0 0.0
    %228 = vmatpush1.msra.mxu0 0.0
    %229 = vmatprep.subr.mxu0 0.0
    %230 = vmatpush1.msra.mxu0 0.0
    %231 = vmatprep.subr.mxu0 0.0
    %232 = vmatpush1.msra.mxu0 0.0
    %233 = vmatprep.subr.mxu0 0.0
    %234 = vmatpush1.msra.mxu0 0.0
    %235 = vmatprep.subr.mxu0 0.0
    %236 = vmatpush1.msra.mxu0 0.0
    %237 = vmatprep.subr.mxu0 0.0
    %238 = vmatpush1.msra.mxu0 0.0
    %239 = vmatprep.subr.mxu0 0.0
    %240 = vmatpush1.msra.mxu0 0.0
    %241 = vmatprep.subr.mxu0 0.0
    %242 = vmatpush1.msra.mxu0 0.0
    %243 = vmatprep.subr.mxu0 0.0
    %244 = vmatpush1.msra.mxu0 0.0
    %245 = vmatprep.subr.mxu0 0.0
    %246 = vmatpush1.msra.mxu0 0.0
    %247 = vmatprep.subr.mxu0 0.0
    %248 = vmatpush1.msra.mxu0 0.0
    %249 = vmatprep.subr.mxu0 0.0
    %250 = vmatpush1.msra.mxu0 0.0
    %251 = vmatprep.subr.mxu0 0.0
    %252 = vmatpush1.msra.mxu0 0.0
    %253 = vmatprep.subr.mxu0 0.0
    %254 = vmatpush1.msra.mxu0 0.0
    %255 = vmatprep.subr.mxu0 0.0
    %256 = vmatpush1.msra.mxu0 0.0
    %257 = vmatprep.subr.mxu0 0.0
    %258 = vmatpush1.msra.mxu0 0.0
    %259 = vmatprep.subr.mxu0 0.0
    %260 = vmatpush1.msra.mxu0 0.0
    %261 = vmatprep.mubr.f32.mxu0 0.0
    %v262 = vand.u32 %v59, 4294901760
    %263 = vmatmul.mubr.f32.gmra.mrb[0].mxu0 %v262
    %v264 = vpop.f32.mrb[0].mxu0
    %v265 = vadd.f32 %v144, %v264
    %v266 = vpop.f32.mrb[0].mxu0
    %267 = vmatprep.mubr.f32.mxu0 0.0
    %v268 = vand.u32 %v62, 4294901760
    %269 = vmatmul.mubr.f32.gmra.mrb[0].mxu0 %v268
    %v270 = vpop.f32.mrb[0].mxu0
    %v271 = vadd.f32 %v154, %v270
    %v272 = vpop.f32.mrb[0].mxu0
    %273 = vdwg.mxu0
    %274 = vmatprep.subr.mxu0 0.0
    %v275 = vand.u32 %v27, 4294901760
    %v276 = vsub.f32 %v27, %v275
    %277 = vmatpush1.msra.mxu0 %v276
    %278 = vmatprep.subr.mxu0 0.0
    %v279 = vand.u32 %v28, 4294901760
    %v280 = vsub.f32 %v28, %v279
    %281 = vmatpush1.msra.mxu0 %v280
    %282 = vmatprep.subr.mxu0 0.0
    %v283 = vand.u32 %v29, 4294901760
    %v284 = vsub.f32 %v29, %v283
    %285 = vmatpush1.msra.mxu0 %v284
    %286 = vmatprep.subr.mxu0 0.0
    %v287 = vand.u32 %v30, 4294901760
    %v288 = vsub.f32 %v30, %v287
    %289 = vmatpush1.msra.mxu0 %v288
    %290 = vmatprep.subr.mxu0 0.0
    %v291 = vand.u32 %v31, 4294901760
    %v292 = vsub.f32 %v31, %v291
    %293 = vmatpush1.msra.mxu0 %v292
    %294 = vmatprep.subr.mxu0 0.0
    %v295 = vand.u32 %v32, 4294901760
    %v296 = vsub.f32 %v32, %v295
    %297 = vmatpush1.msra.mxu0 %v296
    %298 = vmatprep.subr.mxu0 0.0
    %v299 = vand.u32 %v33, 4294901760
    %v300 = vsub.f32 %v33, %v299
    %301 = vmatpush1.msra.mxu0 %v300
    %302 = vmatprep.subr.mxu0 0.0
    %v303 = vand.u32 %v34, 4294901760
    %v304 = vsub.f32 %v34, %v303
    %305 = vmatpush1.msra.mxu0 %v304
    %306 = vmatprep.subr.mxu0 0.0
    %307 = vmatpush1.msra.mxu0 0.0
    %308 = vmatprep.subr.mxu0 0.0
    %309 = vmatpush1.msra.mxu0 0.0
    %310 = vmatprep.subr.mxu0 0.0
    %311 = vmatpush1.msra.mxu0 0.0
    %312 = vmatprep.subr.mxu0 0.0
    %313 = vmatpush1.msra.mxu0 0.0
    %314 = vmatprep.subr.mxu0 0.0
    %315 = vmatpush1.msra.mxu0 0.0
    %316 = vmatprep.subr.mxu0 0.0
    %317 = vmatpush1.msra.mxu0 0.0
    %318 = vmatprep.subr.mxu0 0.0
    %319 = vmatpush1.msra.mxu0 0.0
    %320 = vmatprep.subr.mxu0 0.0
    %321 = vmatpush1.msra.mxu0 0.0
    %322 = vmatprep.subr.mxu0 0.0
    %323 = vmatpush1.msra.mxu0 0.0
    %324 = vmatprep.subr.mxu0 0.0
    %325 = vmatpush1.msra.mxu0 0.0
    %326 = vmatprep.subr.mxu0 0.0
    %327 = vmatpush1.msra.mxu0 0.0
    %328 = vmatprep.subr.mxu0 0.0
    %329 = vmatpush1.msra.mxu0 0.0
    %330 = vmatprep.subr.mxu0 0.0
    %331 = vmatpush1.msra.mxu0 0.0
    %332 = vmatprep.subr.mxu0 0.0
    %333 = vmatpush1.msra.mxu0 0.0
    %334 = vmatprep.subr.mxu0 0.0
    %335 = vmatpush1.msra.mxu0 0.0
    %336 = vmatprep.subr.mxu0 0.0
    %337 = vmatpush1.msra.mxu0 0.0
    %338 = vmatprep.subr.mxu0 0.0
    %339 = vmatpush1.msra.mxu0 0.0
    %340 = vmatprep.subr.mxu0 0.0
    %341 = vmatpush1.msra.mxu0 0.0
    %342 = vmatprep.subr.mxu0 0.0
    %343 = vmatpush1.msra.mxu0 0.0
    %344 = vmatprep.subr.mxu0 0.0
    %345 = vmatpush1.msra.mxu0 0.0
    %346 = vmatprep.subr.mxu0 0.0
    %347 = vmatpush1.msra.mxu0 0.0
    %348 = vmatprep.subr.mxu0 0.0
    %349 = vmatpush1.msra.mxu0 0.0
    %350 = vmatprep.subr.mxu0 0.0
    %351 = vmatpush1.msra.mxu0 0.0
    %352 = vmatprep.subr.mxu0 0.0
    %353 = vmatpush1.msra.mxu0 0.0
    %354 = vmatprep.mubr.f32.mxu0 0.0
    %v355 = vand.u32 %v59, 4294901760
    %v356 = vsub.f32 %v59, %v355
    %357 = vmatmul.mubr.f32.gmra.mrb[0].mxu0 %v356
    %v358 = vpop.f32.mrb[0].mxu0
    %v359 = vadd.f32 %v265, %v358
    %v360 = vpop.f32.mrb[0].mxu0
    %361 = vmatprep.mubr.f32.mxu0 0.0
    %v362 = vand.u32 %v62, 4294901760
    %v363 = vsub.f32 %v62, %v362
    %364 = vmatmul.mubr.f32.gmra.mrb[0].mxu0 %v363
    %v365 = vpop.f32.mrb[0].mxu0
    %v366 = vadd.f32 %v271, %v365
    %v367 = vpop.f32.mrb[0].mxu0
    %368 = vdwg.mxu0
    %369 = vmatprep.subr.mxu0 0.0
    %v370 = vand.u32 %v27, 4294901760
    %371 = vmatpush1.msra.mxu0 %v370
    %372 = vmatprep.subr.mxu0 0.0
    %v373 = vand.u32 %v28, 4294901760
    %374 = vmatpush1.msra.mxu0 %v373
    %375 = vmatprep.subr.mxu0 0.0
    %v376 = vand.u32 %v29, 4294901760
    %377 = vmatpush1.msra.mxu0 %v376
    %378 = vmatprep.subr.mxu0 0.0
    %v379 = vand.u32 %v30, 4294901760
    %380 = vmatpush1.msra.mxu0 %v379
    %381 = vmatprep.subr.mxu0 0.0
    %v382 = vand.u32 %v31, 4294901760
    %383 = vmatpush1.msra.mxu0 %v382
    %384 = vmatprep.subr.mxu0 0.0
    %v385 = vand.u32 %v32, 4294901760
    %386 = vmatpush1.msra.mxu0 %v385
    %387 = vmatprep.subr.mxu0 0.0
    %v388 = vand.u32 %v33, 4294901760
    %389 = vmatpush1.msra.mxu0 %v388
    %390 = vmatprep.subr.mxu0 0.0
    %v391 = vand.u32 %v34, 4294901760
    %392 = vmatpush1.msra.mxu0 %v391
    %393 = vmatprep.subr.mxu0 0.0
    %394 = vmatpush1.msra.mxu0 0.0
    %395 = vmatprep.subr.mxu0 0.0
    %396 = vmatpush1.msra.mxu0 0.0
    %397 = vmatprep.subr.mxu0 0.0
    %398 = vmatpush1.msra.mxu0 0.0
    %399 = vmatprep.subr.mxu0 0.0
    %400 = vmatpush1.msra.mxu0 0.0
    %401 = vmatprep.subr.mxu0 0.0
    %402 = vmatpush1.msra.mxu0 0.0
    %403 = vmatprep.subr.mxu0 0.0
    %404 = vmatpush1.msra.mxu0 0.0
    %405 = vmatprep.subr.mxu0 0.0
    %406 = vmatpush1.msra.mxu0 0.0
    %407 = vmatprep.subr.mxu0 0.0
    %408 = vmatpush1.msra.mxu0 0.0
    %409 = vmatprep.subr.mxu0 0.0
    %410 = vmatpush1.msra.mxu0 0.0
    %411 = vmatprep.subr.mxu0 0.0
    %412 = vmatpush1.msra.mxu0 0.0
    %413 = vmatprep.subr.mxu0 0.0
    %414 = vmatpush1.msra.mxu0 0.0
    %415 = vmatprep.subr.mxu0 0.0
    %416 = vmatpush1.msra.mxu0 0.0
    %417 = vmatprep.subr.mxu0 0.0
    %418 = vmatpush1.msra.mxu0 0.0
    %419 = vmatprep.subr.mxu0 0.0
    %420 = vmatpush1.msra.mxu0 0.0
    %421 = vmatprep.subr.mxu0 0.0
    %422 = vmatpush1.msra.mxu0 0.0
    %423 = vmatprep.subr.mxu0 0.0
    %424 = vmatpush1.msra.mxu0 0.0
    %425 = vmatprep.subr.mxu0 0.0
    %426 = vmatpush1.msra.mxu0 0.0
    %427 = vmatprep.subr.mxu0 0.0
    %428 = vmatpush1.msra.mxu0 0.0
    %429 = vmatprep.subr.mxu0 0.0
    %430 = vmatpush1.msra.mxu0 0.0
    %431 = vmatprep.subr.mxu0 0.0
    %432 = vmatpush1.msra.mxu0 0.0
    %433 = vmatprep.subr.mxu0 0.0
    %434 = vmatpush1.msra.mxu0 0.0
    %435 = vmatprep.subr.mxu0 0.0
    %436 = vmatpush1.msra.mxu0 0.0
    %437 = vmatprep.subr.mxu0 0.0
    %438 = vmatpush1.msra.mxu0 0.0
    %439 = vmatprep.subr.mxu0 0.0
    %440 = vmatpush1.msra.mxu0 0.0
    %441 = vmatprep.mubr.f32.mxu0 0.0
    %v442 = vand.u32 %v59, 4294901760
    %v443 = vsub.f32 %v59, %v442
    %v444 = vand.u32 %v443, 4294901760
    %445 = vmatmul.mubr.f32.gmra.mrb[0].mxu0 %v444
    %v446 = vpop.f32.mrb[0].mxu0
    %v447 = vadd.f32 %v359, %v446
    %v448 = vpop.f32.mrb[0].mxu0
    %449 = vmatprep.mubr.f32.mxu0 0.0
    %v450 = vand.u32 %v62, 4294901760
    %v451 = vsub.f32 %v62, %v450
    %v452 = vand.u32 %v451, 4294901760
    %453 = vmatmul.mubr.f32.gmra.mrb[0].mxu0 %v452
    %v454 = vpop.f32.mrb[0].mxu0
    %v455 = vadd.f32 %v366, %v454
    %v456 = vpop.f32.mrb[0].mxu0
    %457 = vdwg.mxu0
    %458 = vmatprep.subr.mxu0 0.0
    %v459 = vand.u32 %v27, 4294901760
    %v460 = vsub.f32 %v27, %v459
    %v461 = vand.u32 %v460, 4294901760
    %462 = vmatpush1.msra.mxu0 %v461
    %463 = vmatprep.subr.mxu0 0.0
    %v464 = vand.u32 %v28, 4294901760
    %v465 = vsub.f32 %v28, %v464
    %v466 = vand.u32 %v465, 4294901760
    %467 = vmatpush1.msra.mxu0 %v466
    %468 = vmatprep.subr.mxu0 0.0
    %v469 = vand.u32 %v29, 4294901760
    %v470 = vsub.f32 %v29, %v469
    %v471 = vand.u32 %v470, 4294901760
    %472 = vmatpush1.msra.mxu0 %v471
    %473 = vmatprep.subr.mxu0 0.0
    %v474 = vand.u32 %v30, 4294901760
    %v475 = vsub.f32 %v30, %v474
    %v476 = vand.u32 %v475, 4294901760
    %477 = vmatpush1.msra.mxu0 %v476
    %478 = vmatprep.subr.mxu0 0.0
    %v479 = vand.u32 %v31, 4294901760
    %v480 = vsub.f32 %v31, %v479
    %v481 = vand.u32 %v480, 4294901760
    %482 = vmatpush1.msra.mxu0 %v481
    %483 = vmatprep.subr.mxu0 0.0
    %v484 = vand.u32 %v32, 4294901760
    %v485 = vsub.f32 %v32, %v484
    %v486 = vand.u32 %v485, 4294901760
    %487 = vmatpush1.msra.mxu0 %v486
    %488 = vmatprep.subr.mxu0 0.0
    %v489 = vand.u32 %v33, 4294901760
    %v490 = vsub.f32 %v33, %v489
    %v491 = vand.u32 %v490, 4294901760
    %492 = vmatpush1.msra.mxu0 %v491
    %493 = vmatprep.subr.mxu0 0.0
    %v494 = vand.u32 %v34, 4294901760
    %v495 = vsub.f32 %v34, %v494
    %v496 = vand.u32 %v495, 4294901760
    %497 = vmatpush1.msra.mxu0 %v496
    %498 = vmatprep.subr.mxu0 0.0
    %499 = vmatpush1.msra.mxu0 0.0
    %500 = vmatprep.subr.mxu0 0.0
    %501 = vmatpush1.msra.mxu0 0.0
    %502 = vmatprep.subr.mxu0 0.0
    %503 = vmatpush1.msra.mxu0 0.0
    %504 = vmatprep.subr.mxu0 0.0
    %505 = vmatpush1.msra.mxu0 0.0
    %506 = vmatprep.subr.mxu0 0.0
    %507 = vmatpush1.msra.mxu0 0.0
    %508 = vmatprep.subr.mxu0 0.0
    %509 = vmatpush1.msra.mxu0 0.0
    %510 = vmatprep.subr.mxu0 0.0
    %511 = vmatpush1.msra.mxu0 0.0
    %512 = vmatprep.subr.mxu0 0.0
    %513 = vmatpush1.msra.mxu0 0.0
    %514 = vmatprep.subr.mxu0 0.0
    %515 = vmatpush1.msra.mxu0 0.0
    %516 = vmatprep.subr.mxu0 0.0
    %517 = vmatpush1.msra.mxu0 0.0
    %518 = vmatprep.subr.mxu0 0.0
    %519 = vmatpush1.msra.mxu0 0.0
    %520 = vmatprep.subr.mxu0 0.0
    %521 = vmatpush1.msra.mxu0 0.0
    %522 = vmatprep.subr.mxu0 0.0
    %523 = vmatpush1.msra.mxu0 0.0
    %524 = vmatprep.subr.mxu0 0.0
    %525 = vmatpush1.msra.mxu0 0.0
    %526 = vmatprep.subr.mxu0 0.0
    %527 = vmatpush1.msra.mxu0 0.0
    %528 = vmatprep.subr.mxu0 0.0
    %529 = vmatpush1.msra.mxu0 0.0
    %530 = vmatprep.subr.mxu0 0.0
    %531 = vmatpush1.msra.mxu0 0.0
    %532 = vmatprep.subr.mxu0 0.0
    %533 = vmatpush1.msra.mxu0 0.0
    %534 = vmatprep.subr.mxu0 0.0
    %535 = vmatpush1.msra.mxu0 0.0
    %536 = vmatprep.subr.mxu0 0.0
    %537 = vmatpush1.msra.mxu0 0.0
    %538 = vmatprep.subr.mxu0 0.0
    %539 = vmatpush1.msra.mxu0 0.0
    %540 = vmatprep.subr.mxu0 0.0
    %541 = vmatpush1.msra.mxu0 0.0
    %542 = vmatprep.subr.mxu0 0.0
    %543 = vmatpush1.msra.mxu0 0.0
    %544 = vmatprep.subr.mxu0 0.0
    %545 = vmatpush1.msra.mxu0 0.0
    %546 = vmatprep.mubr.f32.mxu0 0.0
    %v547 = vand.u32 %v59, 4294901760
    %548 = vmatmul.mubr.f32.gmra.mrb[0].mxu0 %v547
    %v549 = vpop.f32.mrb[0].mxu0
    %v550 = vadd.f32 %v447, %v549
    %v551 = vpop.f32.mrb[0].mxu0
    %552 = vmatprep.mubr.f32.mxu0 0.0
    %v553 = vand.u32 %v62, 4294901760
    %554 = vmatmul.mubr.f32.gmra.mrb[0].mxu0 %v553
    %v555 = vpop.f32.mrb[0].mxu0
    %v556 = vadd.f32 %v455, %v555
    %v557 = vpop.f32.mrb[0].mxu0
    %558 = vdwg.mxu0
    %559 = vmatprep.subr.mxu0 0.0
    %v560 = vand.u32 %v27, 4294901760
    %561 = vmatpush1.msra.mxu0 %v560
    %562 = vmatprep.subr.mxu0 0.0
    %v563 = vand.u32 %v28, 4294901760
    %564 = vmatpush1.msra.mxu0 %v563
    %565 = vmatprep.subr.mxu0 0.0
    %v566 = vand.u32 %v29, 4294901760
    %567 = vmatpush1.msra.mxu0 %v566
    %568 = vmatprep.subr.mxu0 0.0
    %v569 = vand.u32 %v30, 4294901760
    %570 = vmatpush1.msra.mxu0 %v569
    %571 = vmatprep.subr.mxu0 0.0
    %v572 = vand.u32 %v31, 4294901760
    %573 = vmatpush1.msra.mxu0 %v572
    %574 = vmatprep.subr.mxu0 0.0
    %v575 = vand.u32 %v32, 4294901760
    %576 = vmatpush1.msra.mxu0 %v575
    %577 = vmatprep.subr.mxu0 0.0
    %v578 = vand.u32 %v33, 4294901760
    %579 = vmatpush1.msra.mxu0 %v578
    %580 = vmatprep.subr.mxu0 0.0
    %v581 = vand.u32 %v34, 4294901760
    %582 = vmatpush1.msra.mxu0 %v581
    %583 = vmatprep.subr.mxu0 0.0
    %584 = vmatpush1.msra.mxu0 0.0
    %585 = vmatprep.subr.mxu0 0.0
    %586 = vmatpush1.msra.mxu0 0.0
    %587 = vmatprep.subr.mxu0 0.0
    %588 = vmatpush1.msra.mxu0 0.0
    %589 = vmatprep.subr.mxu0 0.0
    %590 = vmatpush1.msra.mxu0 0.0
    %591 = vmatprep.subr.mxu0 0.0
    %592 = vmatpush1.msra.mxu0 0.0
    %593 = vmatprep.subr.mxu0 0.0
    %594 = vmatpush1.msra.mxu0 0.0
    %595 = vmatprep.subr.mxu0 0.0
    %596 = vmatpush1.msra.mxu0 0.0
    %597 = vmatprep.subr.mxu0 0.0
    %598 = vmatpush1.msra.mxu0 0.0
    %599 = vmatprep.subr.mxu0 0.0
    %600 = vmatpush1.msra.mxu0 0.0
    %601 = vmatprep.subr.mxu0 0.0
    %602 = vmatpush1.msra.mxu0 0.0
    %603 = vmatprep.subr.mxu0 0.0
    %604 = vmatpush1.msra.mxu0 0.0
    %605 = vmatprep.subr.mxu0 0.0
    %606 = vmatpush1.msra.mxu0 0.0
    %607 = vmatprep.subr.mxu0 0.0
    %608 = vmatpush1.msra.mxu0 0.0
    %609 = vmatprep.subr.mxu0 0.0
    %610 = vmatpush1.msra.mxu0 0.0
    %611 = vmatprep.subr.mxu0 0.0
    %612 = vmatpush1.msra.mxu0 0.0
    %613 = vmatprep.subr.mxu0 0.0
    %614 = vmatpush1.msra.mxu0 0.0
    %615 = vmatprep.subr.mxu0 0.0
    %616 = vmatpush1.msra.mxu0 0.0
    %617 = vmatprep.subr.mxu0 0.0
    %618 = vmatpush1.msra.mxu0 0.0
    %619 = vmatprep.subr.mxu0 0.0
    %620 = vmatpush1.msra.mxu0 0.0
    %621 = vmatprep.subr.mxu0 0.0
    %622 = vmatpush1.msra.mxu0 0.0
    %623 = vmatprep.subr.mxu0 0.0
    %624 = vmatpush1.msra.mxu0 0.0
    %625 = vmatprep.subr.mxu0 0.0
    %626 = vmatpush1.msra.mxu0 0.0
    %627 = vmatprep.subr.mxu0 0.0
    %628 = vmatpush1.msra.mxu0 0.0
    %629 = vmatprep.subr.mxu0 0.0
    %630 = vmatpush1.msra.mxu0 0.0
    %631 = vmatprep.mubr.f32.mxu0 0.0
    %v632 = vand.u32 %v59, 4294901760
    %633 = vmatmul.mubr.f32.gmra.mrb[0].mxu0 %v632
    %v634 = vpop.f32.mrb[0].mxu0
    %v635 = vadd.f32 %v550, %v634
    %v636 = vpop.f32.mrb[0].mxu0
    %637 = vmatprep.mubr.f32.mxu0 0.0
    %v638 = vand.u32 %v62, 4294901760
    %639 = vmatmul.mubr.f32.gmra.mrb[0].mxu0 %v638
    %v640 = vpop.f32.mrb[0].mxu0
    %v641 = vadd.f32 %v556, %v640
    %v642 = vpop.f32.mrb[0].mxu0
    %643 = vdwg.mxu0
    %v644 = vmul.f32 %v635, %v635
    %v645 = vmul.f32 %v641, %v641
    %vm646 = vcmask 261120
    %v647 = vsel %vm646, %v644, 0.0
    %648 = vadd.xlane.f32.xlu0 %v647
    %v649 = vpop.xlane.xlu0 %648
    %v650 = vsel %vm646, %v645, 0.0
    %651 = vadd.xlane.f32.xlu0 %v650
    %v652 = vpop.xlane.xlu0 %651
    %v653 = vrsqrt.pop %v649
    %v654 = vmul.f32 %v649, %v653
    %vm655 = vcmp.eq.f32.partialorder %v649, inf
    %v656 = vsel %vm655, %v649, %v654
    %vm657 = vcmp.eq.f32.partialorder %v649, 0.0
    %v658 = vand.u32 %v649, 2147483648
    %v659 = vsel %vm657, %v658, %v656
    %v660 = vrsqrt.pop %v652
    %v661 = vmul.f32 %v652, %v660
    %vm662 = vcmp.eq.f32.partialorder %v652, inf
    %v663 = vsel %vm662, %v652, %v661
    %vm664 = vcmp.eq.f32.partialorder %v652, 0.0
    %v665 = vand.u32 %v652, 2147483648
    %v666 = vsel %vm664, %v665, %v663
    %vm667 = vcmp.gt.f32.partialorder %v659, 1.0
    %vm668 = vcmp.gt.f32.partialorder %v666, 1.0
    %v669 = vadd.f32 %v659, 1e-07
    %v670 = vadd.f32 %v666, 1e-07
    %v671 = vrcp.pop %v669
    %v672 = vmul.f32 1.0, %v671
    %v673 = vrcp.pop %v670
    %v674 = vmul.f32 1.0, %v673
    %v675 = vsel %vm667, %v672, 1.0
    %v676 = vsel %vm668, %v674, 1.0
    %v677 = vmul.f32 %v675, %v41
    %v678 = vmul.f32 %v676, %v42
    %v680 = vsel %vm646, %v635, 0
    %v683 = vsel %vm646, %v641, 0
    %685 = vmatprep.subr.mxu0 0.0
    %v686 = vand.u32 %v35, 4294901760
    %687 = vmatpush1.msra.mxu0 %v686
    %688 = vmatprep.subr.mxu0 0.0
    %v689 = vand.u32 %v36, 4294901760
    %690 = vmatpush1.msra.mxu0 %v689
    %691 = vmatprep.subr.mxu0 0.0
    %v692 = vand.u32 %v37, 4294901760
    %693 = vmatpush1.msra.mxu0 %v692
    %694 = vmatprep.subr.mxu0 0.0
    %v695 = vand.u32 %v38, 4294901760
    %696 = vmatpush1.msra.mxu0 %v695
    %697 = vmatprep.subr.mxu0 0.0
    %698 = vmatpush1.msra.mxu0 0.0
    %699 = vmatprep.subr.mxu0 0.0
    %700 = vmatpush1.msra.mxu0 0.0
    %701 = vmatprep.subr.mxu0 0.0
    %702 = vmatpush1.msra.mxu0 0.0
    %703 = vmatprep.subr.mxu0 0.0
    %704 = vmatpush1.msra.mxu0 0.0
    %705 = vmatprep.subr.mxu0 0.0
    %706 = vmatpush1.msra.mxu0 0.0
    %707 = vmatprep.subr.mxu0 0.0
    %708 = vmatpush1.msra.mxu0 0.0
    %709 = vmatprep.subr.mxu0 0.0
    %710 = vmatpush1.msra.mxu0 0.0
    %711 = vmatprep.subr.mxu0 0.0
    %712 = vmatpush1.msra.mxu0 0.0
    %713 = vmatprep.subr.mxu0 0.0
    %714 = vmatpush1.msra.mxu0 0.0
    %715 = vmatprep.subr.mxu0 0.0
    %716 = vmatpush1.msra.mxu0 0.0
    %717 = vmatprep.subr.mxu0 0.0
    %718 = vmatpush1.msra.mxu0 0.0
    %719 = vmatprep.subr.mxu0 0.0
    %720 = vmatpush1.msra.mxu0 0.0
    %721 = vmatprep.subr.mxu0 0.0
    %722 = vmatpush1.msra.mxu0 0.0
    %723 = vmatprep.subr.mxu0 0.0
    %724 = vmatpush1.msra.mxu0 0.0
    %725 = vmatprep.subr.mxu0 0.0
    %726 = vmatpush1.msra.mxu0 0.0
    %727 = vmatprep.subr.mxu0 0.0
    %728 = vmatpush1.msra.mxu0 0.0
    %729 = vmatprep.subr.mxu0 0.0
    %730 = vmatpush1.msra.mxu0 0.0
    %731 = vmatprep.subr.mxu0 0.0
    %732 = vmatpush1.msra.mxu0 0.0
    %733 = vmatprep.subr.mxu0 0.0
    %734 = vmatpush1.msra.mxu0 0.0
    %735 = vmatprep.subr.mxu0 0.0
    %736 = vmatpush1.msra.mxu0 0.0
    %737 = vmatprep.subr.mxu0 0.0
    %738 = vmatpush1.msra.mxu0 0.0
    %739 = vmatprep.subr.mxu0 0.0
    %740 = vmatpush1.msra.mxu0 0.0
    %741 = vmatprep.subr.mxu0 0.0
    %742 = vmatpush1.msra.mxu0 0.0
    %743 = vmatprep.subr.mxu0 0.0
    %744 = vmatpush1.msra.mxu0 0.0
    %745 = vmatprep.subr.mxu0 0.0
    %746 = vmatpush1.msra.mxu0 0.0
    %747 = vmatprep.subr.mxu0 0.0
    %748 = vmatpush1.msra.mxu0 0.0
    %749 = vmatprep.subr.mxu0 0.0
    %750 = vmatpush1.msra.mxu0 0.0
    %751 = vmatprep.subr.mxu0 0.0
    %752 = vmatpush1.msra.mxu0 0.0
    %753 = vmatprep.mubr.f32.mxu0 0.0
    %v754 = vand.u32 %v680, 4294901760
    %v755 = vsub.f32 %v680, %v754
    %v756 = vand.u32 %v755, 4294901760
    %v757 = vsub.f32 %v755, %v756
    %v758 = vand.u32 %v757, 4294901760
    %759 = vmatmul.mubr.f32.gmra.mrb[0].mxu0 %v758
    %v760 = vpop.f32.mrb[0].mxu0
    %v761 = vadd.f32 0.0, %v760
    %v762 = vpop.f32.mrb[0].mxu0
    %763 = vmatprep.mubr.f32.mxu0 0.0
    %v764 = vand.u32 %v683, 4294901760
    %v765 = vsub.f32 %v683, %v764
    %v766 = vand.u32 %v765, 4294901760
    %v767 = vsub.f32 %v765, %v766
    %v768 = vand.u32 %v767, 4294901760
    %769 = vmatmul.mubr.f32.gmra.mrb[0].mxu0 %v768
    %v770 = vpop.f32.mrb[0].mxu0
    %v771 = vadd.f32 0.0, %v770
    %v772 = vpop.f32.mrb[0].mxu0
    %773 = vdwg.mxu0
    %774 = vmatprep.subr.mxu0 0.0
    %v775 = vand.u32 %v35, 4294901760
    %v776 = vsub.f32 %v35, %v775
    %v777 = vand.u32 %v776, 4294901760
    %v778 = vsub.f32 %v776, %v777
    %v779 = vand.u32 %v778, 4294901760
    %780 = vmatpush1.msra.mxu0 %v779
    %781 = vmatprep.subr.mxu0 0.0
    %v782 = vand.u32 %v36, 4294901760
    %v783 = vsub.f32 %v36, %v782
    %v784 = vand.u32 %v783, 4294901760
    %v785 = vsub.f32 %v783, %v784
    %v786 = vand.u32 %v785, 4294901760
    %787 = vmatpush1.msra.mxu0 %v786
    %788 = vmatprep.subr.mxu0 0.0
    %v789 = vand.u32 %v37, 4294901760
    %v790 = vsub.f32 %v37, %v789
    %v791 = vand.u32 %v790, 4294901760
    %v792 = vsub.f32 %v790, %v791
    %v793 = vand.u32 %v792, 4294901760
    %794 = vmatpush1.msra.mxu0 %v793
    %795 = vmatprep.subr.mxu0 0.0
    %v796 = vand.u32 %v38, 4294901760
    %v797 = vsub.f32 %v38, %v796
    %v798 = vand.u32 %v797, 4294901760
    %v799 = vsub.f32 %v797, %v798
    %v800 = vand.u32 %v799, 4294901760
    %801 = vmatpush1.msra.mxu0 %v800
    %802 = vmatprep.subr.mxu0 0.0
    %803 = vmatpush1.msra.mxu0 0.0
    %804 = vmatprep.subr.mxu0 0.0
    %805 = vmatpush1.msra.mxu0 0.0
    %806 = vmatprep.subr.mxu0 0.0
    %807 = vmatpush1.msra.mxu0 0.0
    %808 = vmatprep.subr.mxu0 0.0
    %809 = vmatpush1.msra.mxu0 0.0
    %810 = vmatprep.subr.mxu0 0.0
    %811 = vmatpush1.msra.mxu0 0.0
    %812 = vmatprep.subr.mxu0 0.0
    %813 = vmatpush1.msra.mxu0 0.0
    %814 = vmatprep.subr.mxu0 0.0
    %815 = vmatpush1.msra.mxu0 0.0
    %816 = vmatprep.subr.mxu0 0.0
    %817 = vmatpush1.msra.mxu0 0.0
    %818 = vmatprep.subr.mxu0 0.0
    %819 = vmatpush1.msra.mxu0 0.0
    %820 = vmatprep.subr.mxu0 0.0
    %821 = vmatpush1.msra.mxu0 0.0
    %822 = vmatprep.subr.mxu0 0.0
    %823 = vmatpush1.msra.mxu0 0.0
    %824 = vmatprep.subr.mxu0 0.0
    %825 = vmatpush1.msra.mxu0 0.0
    %826 = vmatprep.subr.mxu0 0.0
    %827 = vmatpush1.msra.mxu0 0.0
    %828 = vmatprep.subr.mxu0 0.0
    %829 = vmatpush1.msra.mxu0 0.0
    %830 = vmatprep.subr.mxu0 0.0
    %831 = vmatpush1.msra.mxu0 0.0
    %832 = vmatprep.subr.mxu0 0.0
    %833 = vmatpush1.msra.mxu0 0.0
    %834 = vmatprep.subr.mxu0 0.0
    %835 = vmatpush1.msra.mxu0 0.0
    %836 = vmatprep.subr.mxu0 0.0
    %837 = vmatpush1.msra.mxu0 0.0
    %838 = vmatprep.subr.mxu0 0.0
    %839 = vmatpush1.msra.mxu0 0.0
    %840 = vmatprep.subr.mxu0 0.0
    %841 = vmatpush1.msra.mxu0 0.0
    %842 = vmatprep.subr.mxu0 0.0
    %843 = vmatpush1.msra.mxu0 0.0
    %844 = vmatprep.subr.mxu0 0.0
    %845 = vmatpush1.msra.mxu0 0.0
    %846 = vmatprep.subr.mxu0 0.0
    %847 = vmatpush1.msra.mxu0 0.0
    %848 = vmatprep.subr.mxu0 0.0
    %849 = vmatpush1.msra.mxu0 0.0
    %850 = vmatprep.subr.mxu0 0.0
    %851 = vmatpush1.msra.mxu0 0.0
    %852 = vmatprep.subr.mxu0 0.0
    %853 = vmatpush1.msra.mxu0 0.0
    %854 = vmatprep.subr.mxu0 0.0
    %855 = vmatpush1.msra.mxu0 0.0
    %856 = vmatprep.subr.mxu0 0.0
    %857 = vmatpush1.msra.mxu0 0.0
    %858 = vmatprep.mubr.f32.mxu0 0.0
    %v859 = vand.u32 %v680, 4294901760
    %860 = vmatmul.mubr.f32.gmra.mrb[0].mxu0 %v859
    %v861 = vpop.f32.mrb[0].mxu0
    %v862 = vadd.f32 %v761, %v861
    %v863 = vpop.f32.mrb[0].mxu0
    %864 = vmatprep.mubr.f32.mxu0 0.0
    %v865 = vand.u32 %v683, 4294901760
    %866 = vmatmul.mubr.f32.gmra.mrb[0].mxu0 %v865
    %v867 = vpop.f32.mrb[0].mxu0
    %v868 = vadd.f32 %v771, %v867
    %v869 = vpop.f32.mrb[0].mxu0
    %870 = vdwg.mxu0
    %871 = vmatprep.subr.mxu0 0.0
    %v872 = vand.u32 %v35, 4294901760
    %v873 = vsub.f32 %v35, %v872
    %874 = vmatpush1.msra.mxu0 %v873
    %875 = vmatprep.subr.mxu0 0.0
    %v876 = vand.u32 %v36, 4294901760
    %v877 = vsub.f32 %v36, %v876
    %878 = vmatpush1.msra.mxu0 %v877
    %879 = vmatprep.subr.mxu0 0.0
    %v880 = vand.u32 %v37, 4294901760
    %v881 = vsub.f32 %v37, %v880
    %882 = vmatpush1.msra.mxu0 %v881
    %883 = vmatprep.subr.mxu0 0.0
    %v884 = vand.u32 %v38, 4294901760
    %v885 = vsub.f32 %v38, %v884
    %886 = vmatpush1.msra.mxu0 %v885
    %887 = vmatprep.subr.mxu0 0.0
    %888 = vmatpush1.msra.mxu0 0.0
    %889 = vmatprep.subr.mxu0 0.0
    %890 = vmatpush1.msra.mxu0 0.0
    %891 = vmatprep.subr.mxu0 0.0
    %892 = vmatpush1.msra.mxu0 0.0
    %893 = vmatprep.subr.mxu0 0.0
    %894 = vmatpush1.msra.mxu0 0.0
    %895 = vmatprep.subr.mxu0 0.0
    %896 = vmatpush1.msra.mxu0 0.0
    %897 = vmatprep.subr.mxu0 0.0
    %898 = vmatpush1.msra.mxu0 0.0
    %899 = vmatprep.subr.mxu0 0.0
    %900 = vmatpush1.msra.mxu0 0.0
    %901 = vmatprep.subr.mxu0 0.0
    %902 = vmatpush1.msra.mxu0 0.0
    %903 = vmatprep.subr.mxu0 0.0
    %904 = vmatpush1.msra.mxu0 0.0
    %905 = vmatprep.subr.mxu0 0.0
    %906 = vmatpush1.msra.mxu0 0.0
    %907 = vmatprep.subr.mxu0 0.0
    %908 = vmatpush1.msra.mxu0 0.0
    %909 = vmatprep.subr.mxu0 0.0
    %910 = vmatpush1.msra.mxu0 0.0
    %911 = vmatprep.subr.mxu0 0.0
    %912 = vmatpush1.msra.mxu0 0.0
    %913 = vmatprep.subr.mxu0 0.0
    %914 = vmatpush1.msra.mxu0 0.0
    %915 = vmatprep.subr.mxu0 0.0
    %916 = vmatpush1.msra.mxu0 0.0
    %917 = vmatprep.subr.mxu0 0.0
    %918 = vmatpush1.msra.mxu0 0.0
    %919 = vmatprep.subr.mxu0 0.0
    %920 = vmatpush1.msra.mxu0 0.0
    %921 = vmatprep.subr.mxu0 0.0
    %922 = vmatpush1.msra.mxu0 0.0
    %923 = vmatprep.subr.mxu0 0.0
    %924 = vmatpush1.msra.mxu0 0.0
    %925 = vmatprep.subr.mxu0 0.0
    %926 = vmatpush1.msra.mxu0 0.0
    %927 = vmatprep.subr.mxu0 0.0
    %928 = vmatpush1.msra.mxu0 0.0
    %929 = vmatprep.subr.mxu0 0.0
    %930 = vmatpush1.msra.mxu0 0.0
    %931 = vmatprep.subr.mxu0 0.0
    %932 = vmatpush1.msra.mxu0 0.0
    %933 = vmatprep.subr.mxu0 0.0
    %934 = vmatpush1.msra.mxu0 0.0
    %935 = vmatprep.subr.mxu0 0.0
    %936 = vmatpush1.msra.mxu0 0.0
    %937 = vmatprep.subr.mxu0 0.0
    %938 = vmatpush1.msra.mxu0 0.0
    %939 = vmatprep.subr.mxu0 0.0
    %940 = vmatpush1.msra.mxu0 0.0
    %941 = vmatprep.subr.mxu0 0.0
    %942 = vmatpush1.msra.mxu0 0.0
    %943 = vmatprep.mubr.f32.mxu0 0.0
    %v944 = vand.u32 %v680, 4294901760
    %v945 = vsub.f32 %v680, %v944
    %946 = vmatmul.mubr.f32.gmra.mrb[0].mxu0 %v945
    %v947 = vpop.f32.mrb[0].mxu0
    %v948 = vadd.f32 %v862, %v947
    %v949 = vpop.f32.mrb[0].mxu0
    %950 = vmatprep.mubr.f32.mxu0 0.0
    %v951 = vand.u32 %v683, 4294901760
    %v952 = vsub.f32 %v683, %v951
    %953 = vmatmul.mubr.f32.gmra.mrb[0].mxu0 %v952
    %v954 = vpop.f32.mrb[0].mxu0
    %v955 = vadd.f32 %v868, %v954
    %v956 = vpop.f32.mrb[0].mxu0
    %957 = vdwg.mxu0
    %958 = vmatprep.subr.mxu0 0.0
    %v959 = vand.u32 %v35, 4294901760
    %960 = vmatpush1.msra.mxu0 %v959
    %961 = vmatprep.subr.mxu0 0.0
    %v962 = vand.u32 %v36, 4294901760
    %963 = vmatpush1.msra.mxu0 %v962
    %964 = vmatprep.subr.mxu0 0.0
    %v965 = vand.u32 %v37, 4294901760
    %966 = vmatpush1.msra.mxu0 %v965
    %967 = vmatprep.subr.mxu0 0.0
    %v968 = vand.u32 %v38, 4294901760
    %969 = vmatpush1.msra.mxu0 %v968
    %970 = vmatprep.subr.mxu0 0.0
    %971 = vmatpush1.msra.mxu0 0.0
    %972 = vmatprep.subr.mxu0 0.0
    %973 = vmatpush1.msra.mxu0 0.0
    %974 = vmatprep.subr.mxu0 0.0
    %975 = vmatpush1.msra.mxu0 0.0
    %976 = vmatprep.subr.mxu0 0.0
    %977 = vmatpush1.msra.mxu0 0.0
    %978 = vmatprep.subr.mxu0 0.0
    %979 = vmatpush1.msra.mxu0 0.0
    %980 = vmatprep.subr.mxu0 0.0
    %981 = vmatpush1.msra.mxu0 0.0
    %982 = vmatprep.subr.mxu0 0.0
    %983 = vmatpush1.msra.mxu0 0.0
    %984 = vmatprep.subr.mxu0 0.0
    %985 = vmatpush1.msra.mxu0 0.0
    %986 = vmatprep.subr.mxu0 0.0
    %987 = vmatpush1.msra.mxu0 0.0
    %988 = vmatprep.subr.mxu0 0.0
    %989 = vmatpush1.msra.mxu0 0.0
    %990 = vmatprep.subr.mxu0 0.0
    %991 = vmatpush1.msra.mxu0 0.0
    %992 = vmatprep.subr.mxu0 0.0
    %993 = vmatpush1.msra.mxu0 0.0
    %994 = vmatprep.subr.mxu0 0.0
    %995 = vmatpush1.msra.mxu0 0.0
    %996 = vmatprep.subr.mxu0 0.0
    %997 = vmatpush1.msra.mxu0 0.0
    %998 = vmatprep.subr.mxu0 0.0
    %999 = vmatpush1.msra.mxu0 0.0
    %1000 = vmatprep.subr.mxu0 0.0
    %1001 = vmatpush1.msra.mxu0 0.0
    %1002 = vmatprep.subr.mxu0 0.0
    %1003 = vmatpush1.msra.mxu0 0.0
    %1004 = vmatprep.subr.mxu0 0.0
    %1005 = vmatpush1.msra.mxu0 0.0
    %1006 = vmatprep.subr.mxu0 0.0
    %1007 = vmatpush1.msra.mxu0 0.0
    %1008 = vmatprep.subr.mxu0 0.0
    %1009 = vmatpush1.msra.mxu0 0.0
    %1010 = vmatprep.subr.mxu0 0.0
    %1011 = vmatpush1.msra.mxu0 0.0
    %1012 = vmatprep.subr.mxu0 0.0
    %1013 = vmatpush1.msra.mxu0 0.0
    %1014 = vmatprep.subr.mxu0 0.0
    %1015 = vmatpush1.msra.mxu0 0.0
    %1016 = vmatprep.subr.mxu0 0.0
    %1017 = vmatpush1.msra.mxu0 0.0
    %1018 = vmatprep.subr.mxu0 0.0
    %1019 = vmatpush1.msra.mxu0 0.0
    %1020 = vmatprep.subr.mxu0 0.0
    %1021 = vmatpush1.msra.mxu0 0.0
    %1022 = vmatprep.subr.mxu0 0.0
    %1023 = vmatpush1.msra.mxu0 0.0
    %1024 = vmatprep.subr.mxu0 0.0
    %1025 = vmatpush1.msra.mxu0 0.0
    %1026 = vmatprep.mubr.f32.mxu0 0.0
    %v1027 = vand.u32 %v680, 4294901760
    %v1028 = vsub.f32 %v680, %v1027
    %v1029 = vand.u32 %v1028, 4294901760
    %1030 = vmatmul.mubr.f32.gmra.mrb[0].mxu0 %v1029
    %v1031 = vpop.f32.mrb[0].mxu0
    %v1032 = vadd.f32 %v948, %v1031
    %v1033 = vpop.f32.mrb[0].mxu0
    %1034 = vmatprep.mubr.f32.mxu0 0.0
    %v1035 = vand.u32 %v683, 4294901760
    %v1036 = vsub.f32 %v683, %v1035
    %v1037 = vand.u32 %v1036, 4294901760
    %1038 = vmatmul.mubr.f32.gmra.mrb[0].mxu0 %v1037
    %v1039 = vpop.f32.mrb[0].mxu0
    %v1040 = vadd.f32 %v955, %v1039
    %v1041 = vpop.f32.mrb[0].mxu0
    %1042 = vdwg.mxu0
    %1043 = vmatprep.subr.mxu0 0.0
    %v1044 = vand.u32 %v35, 4294901760
    %v1045 = vsub.f32 %v35, %v1044
    %v1046 = vand.u32 %v1045, 4294901760
    %1047 = vmatpush1.msra.mxu0 %v1046
    %1048 = vmatprep.subr.mxu0 0.0
    %v1049 = vand.u32 %v36, 4294901760
    %v1050 = vsub.f32 %v36, %v1049
    %v1051 = vand.u32 %v1050, 4294901760
    %1052 = vmatpush1.msra.mxu0 %v1051
    %1053 = vmatprep.subr.mxu0 0.0
    %v1054 = vand.u32 %v37, 4294901760
    %v1055 = vsub.f32 %v37, %v1054
    %v1056 = vand.u32 %v1055, 4294901760
    %1057 = vmatpush1.msra.mxu0 %v1056
    %1058 = vmatprep.subr.mxu0 0.0
    %v1059 = vand.u32 %v38, 4294901760
    %v1060 = vsub.f32 %v38, %v1059
    %v1061 = vand.u32 %v1060, 4294901760
    %1062 = vmatpush1.msra.mxu0 %v1061
    %1063 = vmatprep.subr.mxu0 0.0
    %1064 = vmatpush1.msra.mxu0 0.0
    %1065 = vmatprep.subr.mxu0 0.0
    %1066 = vmatpush1.msra.mxu0 0.0
    %1067 = vmatprep.subr.mxu0 0.0
    %1068 = vmatpush1.msra.mxu0 0.0
    %1069 = vmatprep.subr.mxu0 0.0
    %1070 = vmatpush1.msra.mxu0 0.0
    %1071 = vmatprep.subr.mxu0 0.0
    %1072 = vmatpush1.msra.mxu0 0.0
    %1073 = vmatprep.subr.mxu0 0.0
    %1074 = vmatpush1.msra.mxu0 0.0
    %1075 = vmatprep.subr.mxu0 0.0
    %1076 = vmatpush1.msra.mxu0 0.0
    %1077 = vmatprep.subr.mxu0 0.0
    %1078 = vmatpush1.msra.mxu0 0.0
    %1079 = vmatprep.subr.mxu0 0.0
    %1080 = vmatpush1.msra.mxu0 0.0
    %1081 = vmatprep.subr.mxu0 0.0
    %1082 = vmatpush1.msra.mxu0 0.0
    %1083 = vmatprep.subr.mxu0 0.0
    %1084 = vmatpush1.msra.mxu0 0.0
    %1085 = vmatprep.subr.mxu0 0.0
    %1086 = vmatpush1.msra.mxu0 0.0
    %1087 = vmatprep.subr.mxu0 0.0
    %1088 = vmatpush1.msra.mxu0 0.0
    %1089 = vmatprep.subr.mxu0 0.0
    %1090 = vmatpush1.msra.mxu0 0.0
    %1091 = vmatprep.subr.mxu0 0.0
    %1092 = vmatpush1.msra.mxu0 0.0
    %1093 = vmatprep.subr.mxu0 0.0
    %1094 = vmatpush1.msra.mxu0 0.0
    %1095 = vmatprep.subr.mxu0 0.0
    %1096 = vmatpush1.msra.mxu0 0.0
    %1097 = vmatprep.subr.mxu0 0.0
    %1098 = vmatpush1.msra.mxu0 0.0
    %1099 = vmatprep.subr.mxu0 0.0
    %1100 = vmatpush1.msra.mxu0 0.0
    %1101 = vmatprep.subr.mxu0 0.0
    %1102 = vmatpush1.msra.mxu0 0.0
    %1103 = vmatprep.subr.mxu0 0.0
    %1104 = vmatpush1.msra.mxu0 0.0
    %1105 = vmatprep.subr.mxu0 0.0
    %1106 = vmatpush1.msra.mxu0 0.0
    %1107 = vmatprep.subr.mxu0 0.0
    %1108 = vmatpush1.msra.mxu0 0.0
    %1109 = vmatprep.subr.mxu0 0.0
    %1110 = vmatpush1.msra.mxu0 0.0
    %1111 = vmatprep.subr.mxu0 0.0
    %1112 = vmatpush1.msra.mxu0 0.0
    %1113 = vmatprep.subr.mxu0 0.0
    %1114 = vmatpush1.msra.mxu0 0.0
    %1115 = vmatprep.subr.mxu0 0.0
    %1116 = vmatpush1.msra.mxu0 0.0
    %1117 = vmatprep.subr.mxu0 0.0
    %1118 = vmatpush1.msra.mxu0 0.0
    %1119 = vmatprep.mubr.f32.mxu0 0.0
    %v1120 = vand.u32 %v680, 4294901760
    %1121 = vmatmul.mubr.f32.gmra.mrb[0].mxu0 %v1120
    %v1122 = vpop.f32.mrb[0].mxu0
    %v1123 = vadd.f32 %v1032, %v1122
    %v1124 = vpop.f32.mrb[0].mxu0
    %1125 = vmatprep.mubr.f32.mxu0 0.0
    %v1126 = vand.u32 %v683, 4294901760
    %1127 = vmatmul.mubr.f32.gmra.mrb[0].mxu0 %v1126
    %v1128 = vpop.f32.mrb[0].mxu0
    %v1129 = vadd.f32 %v1040, %v1128
    %v1130 = vpop.f32.mrb[0].mxu0
    %1131 = vdwg.mxu0
    %1132 = vmatprep.subr.mxu0 0.0
    %v1133 = vand.u32 %v35, 4294901760
    %1134 = vmatpush1.msra.mxu0 %v1133
    %1135 = vmatprep.subr.mxu0 0.0
    %v1136 = vand.u32 %v36, 4294901760
    %1137 = vmatpush1.msra.mxu0 %v1136
    %1138 = vmatprep.subr.mxu0 0.0
    %v1139 = vand.u32 %v37, 4294901760
    %1140 = vmatpush1.msra.mxu0 %v1139
    %1141 = vmatprep.subr.mxu0 0.0
    %v1142 = vand.u32 %v38, 4294901760
    %1143 = vmatpush1.msra.mxu0 %v1142
    %1144 = vmatprep.subr.mxu0 0.0
    %1145 = vmatpush1.msra.mxu0 0.0
    %1146 = vmatprep.subr.mxu0 0.0
    %1147 = vmatpush1.msra.mxu0 0.0
    %1148 = vmatprep.subr.mxu0 0.0
    %1149 = vmatpush1.msra.mxu0 0.0
    %1150 = vmatprep.subr.mxu0 0.0
    %1151 = vmatpush1.msra.mxu0 0.0
    %1152 = vmatprep.subr.mxu0 0.0
    %1153 = vmatpush1.msra.mxu0 0.0
    %1154 = vmatprep.subr.mxu0 0.0
    %1155 = vmatpush1.msra.mxu0 0.0
    %1156 = vmatprep.subr.mxu0 0.0
    %1157 = vmatpush1.msra.mxu0 0.0
    %1158 = vmatprep.subr.mxu0 0.0
    %1159 = vmatpush1.msra.mxu0 0.0
    %1160 = vmatprep.subr.mxu0 0.0
    %1161 = vmatpush1.msra.mxu0 0.0
    %1162 = vmatprep.subr.mxu0 0.0
    %1163 = vmatpush1.msra.mxu0 0.0
    %1164 = vmatprep.subr.mxu0 0.0
    %1165 = vmatpush1.msra.mxu0 0.0
    %1166 = vmatprep.subr.mxu0 0.0
    %1167 = vmatpush1.msra.mxu0 0.0
    %1168 = vmatprep.subr.mxu0 0.0
    %1169 = vmatpush1.msra.mxu0 0.0
    %1170 = vmatprep.subr.mxu0 0.0
    %1171 = vmatpush1.msra.mxu0 0.0
    %1172 = vmatprep.subr.mxu0 0.0
    %1173 = vmatpush1.msra.mxu0 0.0
    %1174 = vmatprep.subr.mxu0 0.0
    %1175 = vmatpush1.msra.mxu0 0.0
    %1176 = vmatprep.subr.mxu0 0.0
    %1177 = vmatpush1.msra.mxu0 0.0
    %1178 = vmatprep.subr.mxu0 0.0
    %1179 = vmatpush1.msra.mxu0 0.0
    %1180 = vmatprep.subr.mxu0 0.0
    %1181 = vmatpush1.msra.mxu0 0.0
    %1182 = vmatprep.subr.mxu0 0.0
    %1183 = vmatpush1.msra.mxu0 0.0
    %1184 = vmatprep.subr.mxu0 0.0
    %1185 = vmatpush1.msra.mxu0 0.0
    %1186 = vmatprep.subr.mxu0 0.0
    %1187 = vmatpush1.msra.mxu0 0.0
    %1188 = vmatprep.subr.mxu0 0.0
    %1189 = vmatpush1.msra.mxu0 0.0
    %1190 = vmatprep.subr.mxu0 0.0
    %1191 = vmatpush1.msra.mxu0 0.0
    %1192 = vmatprep.subr.mxu0 0.0
    %1193 = vmatpush1.msra.mxu0 0.0
    %1194 = vmatprep.subr.mxu0 0.0
    %1195 = vmatpush1.msra.mxu0 0.0
    %1196 = vmatprep.subr.mxu0 0.0
    %1197 = vmatpush1.msra.mxu0 0.0
    %1198 = vmatprep.subr.mxu0 0.0
    %1199 = vmatpush1.msra.mxu0 0.0
    %1200 = vmatprep.mubr.f32.mxu0 0.0
    %v1201 = vand.u32 %v680, 4294901760
    %1202 = vmatmul.mubr.f32.gmra.mrb[0].mxu0 %v1201
    %v1203 = vpop.f32.mrb[0].mxu0
    %v1204 = vadd.f32 %v1123, %v1203
    %v1205 = vpop.f32.mrb[0].mxu0
    %1206 = vmatprep.mubr.f32.mxu0 0.0
    %v1207 = vand.u32 %v683, 4294901760
    %1208 = vmatmul.mubr.f32.gmra.mrb[0].mxu0 %v1207
    %v1209 = vpop.f32.mrb[0].mxu0
    %v1210 = vadd.f32 %v1129, %v1209
    %v1211 = vpop.f32.mrb[0].mxu0
    %1212 = vdwg.mxu0
    %1214 = vset.pattern.permute.xlu0 0
    %1215 = vperm.xlu0 %1214, %v677
    %v1216 = vpop.permute.xlu0 %1215
    %1219 = vset.pattern.permute.xlu0 0
    %1220 = vperm.xlu0 %1219, %v678
    %v1221 = vpop.permute.xlu0 %1220
    %v1223 = vmul.f32 %v1204, %v1216
    %v1224 = vmul.f32 %v1210, %v1221
    %1225 = vst.msk [vmem:[#allocation2] sm:$0xff] %vm646, %v1223
    %1226 = vst.msk [vmem:[#allocation2 + $0x8] sm:$0xff] %vm646, %v1224
    %v1227 = vld [vmem:[%s1] sm:$0xff]
    %v1228 = vld [vmem:[%s1 + $0x8] sm:$0xff]
    %v1229 = vld [vmem:[%s3] sm:$0xff]
    %v1230 = vld [vmem:[%s3 + $0x8] sm:$0xff]
    %1231 = vset.pattern.permute.xlu0 0
    %1232 = vperm.xlu0 %1231, %v1227
    %v1233 = vpop.permute.xlu0 %1232
    %1234 = vset.pattern.permute.xlu0 0
    %1235 = vperm.xlu0 %1234, %v1228
    %v1236 = vpop.permute.xlu0 %1235
    %vm1237 = vcmp.eq.s32.totalorder %v44, %v1233
    %vm1238 = vcmp.eq.s32.totalorder %v44, %v1236
    %v1239 = vsel %vm1237, 1, 0
    %v1240 = vsel %vm1238, 1, 0
    %v1241 = vcvt.s32.f32 %v1239
    %v1242 = vcvt.s32.f32 %v1240
    %v1244 = vsel %vm57, %v1241, 0
    %v1247 = vsel %vm57, %v1242, 0
    %1249 = vmatprep.subr.mxu0 0.0
    %v1250 = vand.u32 %v27, 4294901760
    %1251 = vmatpush1.msra.mxu0 %v1250
    %1252 = vmatprep.subr.mxu0 0.0
    %v1253 = vand.u32 %v28, 4294901760
    %1254 = vmatpush1.msra.mxu0 %v1253
    %1255 = vmatprep.subr.mxu0 0.0
    %v1256 = vand.u32 %v29, 4294901760
    %1257 = vmatpush1.msra.mxu0 %v1256
    %1258 = vmatprep.subr.mxu0 0.0
    %v1259 = vand.u32 %v30, 4294901760
    %1260 = vmatpush1.msra.mxu0 %v1259
    %1261 = vmatprep.subr.mxu0 0.0
    %v1262 = vand.u32 %v31, 4294901760
    %1263 = vmatpush1.msra.mxu0 %v1262
    %1264 = vmatprep.subr.mxu0 0.0
    %v1265 = vand.u32 %v32, 4294901760
    %1266 = vmatpush1.msra.mxu0 %v1265
    %1267 = vmatprep.subr.mxu0 0.0
    %v1268 = vand.u32 %v33, 4294901760
    %1269 = vmatpush1.msra.mxu0 %v1268
    %1270 = vmatprep.subr.mxu0 0.0
    %v1271 = vand.u32 %v34, 4294901760
    %1272 = vmatpush1.msra.mxu0 %v1271
    %1273 = vmatprep.subr.mxu0 0.0
    %1274 = vmatpush1.msra.mxu0 0.0
    %1275 = vmatprep.subr.mxu0 0.0
    %1276 = vmatpush1.msra.mxu0 0.0
    %1277 = vmatprep.subr.mxu0 0.0
    %1278 = vmatpush1.msra.mxu0 0.0
    %1279 = vmatprep.subr.mxu0 0.0
    %1280 = vmatpush1.msra.mxu0 0.0
    %1281 = vmatprep.subr.mxu0 0.0
    %1282 = vmatpush1.msra.mxu0 0.0
    %1283 = vmatprep.subr.mxu0 0.0
    %1284 = vmatpush1.msra.mxu0 0.0
    %1285 = vmatprep.subr.mxu0 0.0
    %1286 = vmatpush1.msra.mxu0 0.0
    %1287 = vmatprep.subr.mxu0 0.0
    %1288 = vmatpush1.msra.mxu0 0.0
    %1289 = vmatprep.subr.mxu0 0.0
    %1290 = vmatpush1.msra.mxu0 0.0
    %1291 = vmatprep.subr.mxu0 0.0
    %1292 = vmatpush1.msra.mxu0 0.0
    %1293 = vmatprep.subr.mxu0 0.0
    %1294 = vmatpush1.msra.mxu0 0.0
    %1295 = vmatprep.subr.mxu0 0.0
    %1296 = vmatpush1.msra.mxu0 0.0
    %1297 = vmatprep.subr.mxu0 0.0
    %1298 = vmatpush1.msra.mxu0 0.0
    %1299 = vmatprep.subr.mxu0 0.0
    %1300 = vmatpush1.msra.mxu0 0.0
    %1301 = vmatprep.subr.mxu0 0.0
    %1302 = vmatpush1.msra.mxu0 0.0
    %1303 = vmatprep.subr.mxu0 0.0
    %1304 = vmatpush1.msra.mxu0 0.0
    %1305 = vmatprep.subr.mxu0 0.0
    %1306 = vmatpush1.msra.mxu0 0.0
    %1307 = vmatprep.subr.mxu0 0.0
    %1308 = vmatpush1.msra.mxu0 0.0
    %1309 = vmatprep.subr.mxu0 0.0
    %1310 = vmatpush1.msra.mxu0 0.0
    %1311 = vmatprep.subr.mxu0 0.0
    %1312 = vmatpush1.msra.mxu0 0.0
    %1313 = vmatprep.subr.mxu0 0.0
    %1314 = vmatpush1.msra.mxu0 0.0
    %1315 = vmatprep.subr.mxu0 0.0
    %1316 = vmatpush1.msra.mxu0 0.0
    %1317 = vmatprep.subr.mxu0 0.0
    %1318 = vmatpush1.msra.mxu0 0.0
    %1319 = vmatprep.subr.mxu0 0.0
    %1320 = vmatpush1.msra.mxu0 0.0
    %1321 = vmatprep.mubr.f32.mxu0 0.0
    %v1322 = vand.u32 %v1244, 4294901760
    %v1323 = vsub.f32 %v1244, %v1322
    %v1324 = vand.u32 %v1323, 4294901760
    %v1325 = vsub.f32 %v1323, %v1324
    %v1326 = vand.u32 %v1325, 4294901760
    %1327 = vmatmul.mubr.f32.gmra.mrb[0].mxu0 %v1326
    %v1328 = vpop.f32.mrb[0].mxu0
    %v1329 = vadd.f32 0.0, %v1328
    %v1330 = vpop.f32.mrb[0].mxu0
    %1331 = vmatprep.mubr.f32.mxu0 0.0
    %v1332 = vand.u32 %v1247, 4294901760
    %v1333 = vsub.f32 %v1247, %v1332
    %v1334 = vand.u32 %v1333, 4294901760
    %v1335 = vsub.f32 %v1333, %v1334
    %v1336 = vand.u32 %v1335, 4294901760
    %1337 = vmatmul.mubr.f32.gmra.mrb[0].mxu0 %v1336
    %v1338 = vpop.f32.mrb[0].mxu0
    %v1339 = vadd.f32 0.0, %v1338
    %v1340 = vpop.f32.mrb[0].mxu0
    %1341 = vdwg.mxu0
    %1342 = vmatprep.subr.mxu0 0.0
    %v1343 = vand.u32 %v27, 4294901760
    %v1344 = vsub.f32 %v27, %v1343
    %v1345 = vand.u32 %v1344, 4294901760
    %v1346 = vsub.f32 %v1344, %v1345
    %v1347 = vand.u32 %v1346, 4294901760
    %1348 = vmatpush1.msra.mxu0 %v1347
    %1349 = vmatprep.subr.mxu0 0.0
    %v1350 = vand.u32 %v28, 4294901760
    %v1351 = vsub.f32 %v28, %v1350
    %v1352 = vand.u32 %v1351, 4294901760
    %v1353 = vsub.f32 %v1351, %v1352
    %v1354 = vand.u32 %v1353, 4294901760
    %1355 = vmatpush1.msra.mxu0 %v1354
    %1356 = vmatprep.subr.mxu0 0.0
    %v1357 = vand.u32 %v29, 4294901760
    %v1358 = vsub.f32 %v29, %v1357
    %v1359 = vand.u32 %v1358, 4294901760
    %v1360 = vsub.f32 %v1358, %v1359
    %v1361 = vand.u32 %v1360, 4294901760
    %1362 = vmatpush1.msra.mxu0 %v1361
    %1363 = vmatprep.subr.mxu0 0.0
    %v1364 = vand.u32 %v30, 4294901760
    %v1365 = vsub.f32 %v30, %v1364
    %v1366 = vand.u32 %v1365, 4294901760
    %v1367 = vsub.f32 %v1365, %v1366
    %v1368 = vand.u32 %v1367, 4294901760
    %1369 = vmatpush1.msra.mxu0 %v1368
    %1370 = vmatprep.subr.mxu0 0.0
    %v1371 = vand.u32 %v31, 4294901760
    %v1372 = vsub.f32 %v31, %v1371
    %v1373 = vand.u32 %v1372, 4294901760
    %v1374 = vsub.f32 %v1372, %v1373
    %v1375 = vand.u32 %v1374, 4294901760
    %1376 = vmatpush1.msra.mxu0 %v1375
    %1377 = vmatprep.subr.mxu0 0.0
    %v1378 = vand.u32 %v32, 4294901760
    %v1379 = vsub.f32 %v32, %v1378
    %v1380 = vand.u32 %v1379, 4294901760
    %v1381 = vsub.f32 %v1379, %v1380
    %v1382 = vand.u32 %v1381, 4294901760
    %1383 = vmatpush1.msra.mxu0 %v1382
    %1384 = vmatprep.subr.mxu0 0.0
    %v1385 = vand.u32 %v33, 4294901760
    %v1386 = vsub.f32 %v33, %v1385
    %v1387 = vand.u32 %v1386, 4294901760
    %v1388 = vsub.f32 %v1386, %v1387
    %v1389 = vand.u32 %v1388, 4294901760
    %1390 = vmatpush1.msra.mxu0 %v1389
    %1391 = vmatprep.subr.mxu0 0.0
    %v1392 = vand.u32 %v34, 4294901760
    %v1393 = vsub.f32 %v34, %v1392
    %v1394 = vand.u32 %v1393, 4294901760
    %v1395 = vsub.f32 %v1393, %v1394
    %v1396 = vand.u32 %v1395, 4294901760
    %1397 = vmatpush1.msra.mxu0 %v1396
    %1398 = vmatprep.subr.mxu0 0.0
    %1399 = vmatpush1.msra.mxu0 0.0
    %1400 = vmatprep.subr.mxu0 0.0
    %1401 = vmatpush1.msra.mxu0 0.0
    %1402 = vmatprep.subr.mxu0 0.0
    %1403 = vmatpush1.msra.mxu0 0.0
    %1404 = vmatprep.subr.mxu0 0.0
    %1405 = vmatpush1.msra.mxu0 0.0
    %1406 = vmatprep.subr.mxu0 0.0
    %1407 = vmatpush1.msra.mxu0 0.0
    %1408 = vmatprep.subr.mxu0 0.0
    %1409 = vmatpush1.msra.mxu0 0.0
    %1410 = vmatprep.subr.mxu0 0.0
    %1411 = vmatpush1.msra.mxu0 0.0
    %1412 = vmatprep.subr.mxu0 0.0
    %1413 = vmatpush1.msra.mxu0 0.0
    %1414 = vmatprep.subr.mxu0 0.0
    %1415 = vmatpush1.msra.mxu0 0.0
    %1416 = vmatprep.subr.mxu0 0.0
    %1417 = vmatpush1.msra.mxu0 0.0
    %1418 = vmatprep.subr.mxu0 0.0
    %1419 = vmatpush1.msra.mxu0 0.0
    %1420 = vmatprep.subr.mxu0 0.0
    %1421 = vmatpush1.msra.mxu0 0.0
    %1422 = vmatprep.subr.mxu0 0.0
    %1423 = vmatpush1.msra.mxu0 0.0
    %1424 = vmatprep.subr.mxu0 0.0
    %1425 = vmatpush1.msra.mxu0 0.0
    %1426 = vmatprep.subr.mxu0 0.0
    %1427 = vmatpush1.msra.mxu0 0.0
    %1428 = vmatprep.subr.mxu0 0.0
    %1429 = vmatpush1.msra.mxu0 0.0
    %1430 = vmatprep.subr.mxu0 0.0
    %1431 = vmatpush1.msra.mxu0 0.0
    %1432 = vmatprep.subr.mxu0 0.0
    %1433 = vmatpush1.msra.mxu0 0.0
    %1434 = vmatprep.subr.mxu0 0.0
    %1435 = vmatpush1.msra.mxu0 0.0
    %1436 = vmatprep.subr.mxu0 0.0
    %1437 = vmatpush1.msra.mxu0 0.0
    %1438 = vmatprep.subr.mxu0 0.0
    %1439 = vmatpush1.msra.mxu0 0.0
    %1440 = vmatprep.subr.mxu0 0.0
    %1441 = vmatpush1.msra.mxu0 0.0
    %1442 = vmatprep.subr.mxu0 0.0
    %1443 = vmatpush1.msra.mxu0 0.0
    %1444 = vmatprep.subr.mxu0 0.0
    %1445 = vmatpush1.msra.mxu0 0.0
    %1446 = vmatprep.mubr.f32.mxu0 0.0
    %v1447 = vand.u32 %v1244, 4294901760
    %1448 = vmatmul.mubr.f32.gmra.mrb[0].mxu0 %v1447
    %v1449 = vpop.f32.mrb[0].mxu0
    %v1450 = vadd.f32 %v1329, %v1449
    %v1451 = vpop.f32.mrb[0].mxu0
    %1452 = vmatprep.mubr.f32.mxu0 0.0
    %v1453 = vand.u32 %v1247, 4294901760
    %1454 = vmatmul.mubr.f32.gmra.mrb[0].mxu0 %v1453
    %v1455 = vpop.f32.mrb[0].mxu0
    %v1456 = vadd.f32 %v1339, %v1455
    %v1457 = vpop.f32.mrb[0].mxu0
    %1458 = vdwg.mxu0
    %1459 = vmatprep.subr.mxu0 0.0
    %v1460 = vand.u32 %v27, 4294901760
    %v1461 = vsub.f32 %v27, %v1460
    %1462 = vmatpush1.msra.mxu0 %v1461
    %1463 = vmatprep.subr.mxu0 0.0
    %v1464 = vand.u32 %v28, 4294901760
    %v1465 = vsub.f32 %v28, %v1464
    %1466 = vmatpush1.msra.mxu0 %v1465
    %1467 = vmatprep.subr.mxu0 0.0
    %v1468 = vand.u32 %v29, 4294901760
    %v1469 = vsub.f32 %v29, %v1468
    %1470 = vmatpush1.msra.mxu0 %v1469
    %1471 = vmatprep.subr.mxu0 0.0
    %v1472 = vand.u32 %v30, 4294901760
    %v1473 = vsub.f32 %v30, %v1472
    %1474 = vmatpush1.msra.mxu0 %v1473
    %1475 = vmatprep.subr.mxu0 0.0
    %v1476 = vand.u32 %v31, 4294901760
    %v1477 = vsub.f32 %v31, %v1476
    %1478 = vmatpush1.msra.mxu0 %v1477
    %1479 = vmatprep.subr.mxu0 0.0
    %v1480 = vand.u32 %v32, 4294901760
    %v1481 = vsub.f32 %v32, %v1480
    %1482 = vmatpush1.msra.mxu0 %v1481
    %1483 = vmatprep.subr.mxu0 0.0
    %v1484 = vand.u32 %v33, 4294901760
    %v1485 = vsub.f32 %v33, %v1484
    %1486 = vmatpush1.msra.mxu0 %v1485
    %1487 = vmatprep.subr.mxu0 0.0
    %v1488 = vand.u32 %v34, 4294901760
    %v1489 = vsub.f32 %v34, %v1488
    %1490 = vmatpush1.msra.mxu0 %v1489
    %1491 = vmatprep.subr.mxu0 0.0
    %1492 = vmatpush1.msra.mxu0 0.0
    %1493 = vmatprep.subr.mxu0 0.0
    %1494 = vmatpush1.msra.mxu0 0.0
    %1495 = vmatprep.subr.mxu0 0.0
    %1496 = vmatpush1.msra.mxu0 0.0
    %1497 = vmatprep.subr.mxu0 0.0
    %1498 = vmatpush1.msra.mxu0 0.0
    %1499 = vmatprep.subr.mxu0 0.0
    %1500 = vmatpush1.msra.mxu0 0.0
    %1501 = vmatprep.subr.mxu0 0.0
    %1502 = vmatpush1.msra.mxu0 0.0
    %1503 = vmatprep.subr.mxu0 0.0
    %1504 = vmatpush1.msra.mxu0 0.0
    %1505 = vmatprep.subr.mxu0 0.0
    %1506 = vmatpush1.msra.mxu0 0.0
    %1507 = vmatprep.subr.mxu0 0.0
    %1508 = vmatpush1.msra.mxu0 0.0
    %1509 = vmatprep.subr.mxu0 0.0
    %1510 = vmatpush1.msra.mxu0 0.0
    %1511 = vmatprep.subr.mxu0 0.0
    %1512 = vmatpush1.msra.mxu0 0.0
    %1513 = vmatprep.subr.mxu0 0.0
    %1514 = vmatpush1.msra.mxu0 0.0
    %1515 = vmatprep.subr.mxu0 0.0
    %1516 = vmatpush1.msra.mxu0 0.0
    %1517 = vmatprep.subr.mxu0 0.0
    %1518 = vmatpush1.msra.mxu0 0.0
    %1519 = vmatprep.subr.mxu0 0.0
    %1520 = vmatpush1.msra.mxu0 0.0
    %1521 = vmatprep.subr.mxu0 0.0
    %1522 = vmatpush1.msra.mxu0 0.0
    %1523 = vmatprep.subr.mxu0 0.0
    %1524 = vmatpush1.msra.mxu0 0.0
    %1525 = vmatprep.subr.mxu0 0.0
    %1526 = vmatpush1.msra.mxu0 0.0
    %1527 = vmatprep.subr.mxu0 0.0
    %1528 = vmatpush1.msra.mxu0 0.0
    %1529 = vmatprep.subr.mxu0 0.0
    %1530 = vmatpush1.msra.mxu0 0.0
    %1531 = vmatprep.subr.mxu0 0.0
    %1532 = vmatpush1.msra.mxu0 0.0
    %1533 = vmatprep.subr.mxu0 0.0
    %1534 = vmatpush1.msra.mxu0 0.0
    %1535 = vmatprep.subr.mxu0 0.0
    %1536 = vmatpush1.msra.mxu0 0.0
    %1537 = vmatprep.subr.mxu0 0.0
    %1538 = vmatpush1.msra.mxu0 0.0
    %1539 = vmatprep.mubr.f32.mxu0 0.0
    %v1540 = vand.u32 %v1244, 4294901760
    %v1541 = vsub.f32 %v1244, %v1540
    %1542 = vmatmul.mubr.f32.gmra.mrb[0].mxu0 %v1541
    %v1543 = vpop.f32.mrb[0].mxu0
    %v1544 = vadd.f32 %v1450, %v1543
    %v1545 = vpop.f32.mrb[0].mxu0
    %1546 = vmatprep.mubr.f32.mxu0 0.0
    %v1547 = vand.u32 %v1247, 4294901760
    %v1548 = vsub.f32 %v1247, %v1547
    %1549 = vmatmul.mubr.f32.gmra.mrb[0].mxu0 %v1548
    %v1550 = vpop.f32.mrb[0].mxu0
    %v1551 = vadd.f32 %v1456, %v1550
    %v1552 = vpop.f32.mrb[0].mxu0
    %1553 = vdwg.mxu0
    %1554 = vmatprep.subr.mxu0 0.0
    %v1555 = vand.u32 %v27, 4294901760
    %1556 = vmatpush1.msra.mxu0 %v1555
    %1557 = vmatprep.subr.mxu0 0.0
    %v1558 = vand.u32 %v28, 4294901760
    %1559 = vmatpush1.msra.mxu0 %v1558
    %1560 = vmatprep.subr.mxu0 0.0
    %v1561 = vand.u32 %v29, 4294901760
    %1562 = vmatpush1.msra.mxu0 %v1561
    %1563 = vmatprep.subr.mxu0 0.0
    %v1564 = vand.u32 %v30, 4294901760
    %1565 = vmatpush1.msra.mxu0 %v1564
    %1566 = vmatprep.subr.mxu0 0.0
    %v1567 = vand.u32 %v31, 4294901760
    %1568 = vmatpush1.msra.mxu0 %v1567
    %1569 = vmatprep.subr.mxu0 0.0
    %v1570 = vand.u32 %v32, 4294901760
    %1571 = vmatpush1.msra.mxu0 %v1570
    %1572 = vmatprep.subr.mxu0 0.0
    %v1573 = vand.u32 %v33, 4294901760
    %1574 = vmatpush1.msra.mxu0 %v1573
    %1575 = vmatprep.subr.mxu0 0.0
    %v1576 = vand.u32 %v34, 4294901760
    %1577 = vmatpush1.msra.mxu0 %v1576
    %1578 = vmatprep.subr.mxu0 0.0
    %1579 = vmatpush1.msra.mxu0 0.0
    %1580 = vmatprep.subr.mxu0 0.0
    %1581 = vmatpush1.msra.mxu0 0.0
    %1582 = vmatprep.subr.mxu0 0.0
    %1583 = vmatpush1.msra.mxu0 0.0
    %1584 = vmatprep.subr.mxu0 0.0
    %1585 = vmatpush1.msra.mxu0 0.0
    %1586 = vmatprep.subr.mxu0 0.0
    %1587 = vmatpush1.msra.mxu0 0.0
    %1588 = vmatprep.subr.mxu0 0.0
    %1589 = vmatpush1.msra.mxu0 0.0
    %1590 = vmatprep.subr.mxu0 0.0
    %1591 = vmatpush1.msra.mxu0 0.0
    %1592 = vmatprep.subr.mxu0 0.0
    %1593 = vmatpush1.msra.mxu0 0.0
    %1594 = vmatprep.subr.mxu0 0.0
    %1595 = vmatpush1.msra.mxu0 0.0
    %1596 = vmatprep.subr.mxu0 0.0
    %1597 = vmatpush1.msra.mxu0 0.0
    %1598 = vmatprep.subr.mxu0 0.0
    %1599 = vmatpush1.msra.mxu0 0.0
    %1600 = vmatprep.subr.mxu0 0.0
    %1601 = vmatpush1.msra.mxu0 0.0
    %1602 = vmatprep.subr.mxu0 0.0
    %1603 = vmatpush1.msra.mxu0 0.0
    %1604 = vmatprep.subr.mxu0 0.0
    %1605 = vmatpush1.msra.mxu0 0.0
    %1606 = vmatprep.subr.mxu0 0.0
    %1607 = vmatpush1.msra.mxu0 0.0
    %1608 = vmatprep.subr.mxu0 0.0
    %1609 = vmatpush1.msra.mxu0 0.0
    %1610 = vmatprep.subr.mxu0 0.0
    %1611 = vmatpush1.msra.mxu0 0.0
    %1612 = vmatprep.subr.mxu0 0.0
    %1613 = vmatpush1.msra.mxu0 0.0
    %1614 = vmatprep.subr.mxu0 0.0
    %1615 = vmatpush1.msra.mxu0 0.0
    %1616 = vmatprep.subr.mxu0 0.0
    %1617 = vmatpush1.msra.mxu0 0.0
    %1618 = vmatprep.subr.mxu0 0.0
    %1619 = vmatpush1.msra.mxu0 0.0
    %1620 = vmatprep.subr.mxu0 0.0
    %1621 = vmatpush1.msra.mxu0 0.0
    %1622 = vmatprep.subr.mxu0 0.0
    %1623 = vmatpush1.msra.mxu0 0.0
    %1624 = vmatprep.subr.mxu0 0.0
    %1625 = vmatpush1.msra.mxu0 0.0
    %1626 = vmatprep.mubr.f32.mxu0 0.0
    %v1627 = vand.u32 %v1244, 4294901760
    %v1628 = vsub.f32 %v1244, %v1627
    %v1629 = vand.u32 %v1628, 4294901760
    %1630 = vmatmul.mubr.f32.gmra.mrb[0].mxu0 %v1629
    %v1631 = vpop.f32.mrb[0].mxu0
    %v1632 = vadd.f32 %v1544, %v1631
    %v1633 = vpop.f32.mrb[0].mxu0
    %1634 = vmatprep.mubr.f32.mxu0 0.0
    %v1635 = vand.u32 %v1247, 4294901760
    %v1636 = vsub.f32 %v1247, %v1635
    %v1637 = vand.u32 %v1636, 4294901760
    %1638 = vmatmul.mubr.f32.gmra.mrb[0].mxu0 %v1637
    %v1639 = vpop.f32.mrb[0].mxu0
    %v1640 = vadd.f32 %v1551, %v1639
    %v1641 = vpop.f32.mrb[0].mxu0
    %1642 = vdwg.mxu0
    %1643 = vmatprep.subr.mxu0 0.0
    %v1644 = vand.u32 %v27, 4294901760
    %v1645 = vsub.f32 %v27, %v1644
    %v1646 = vand.u32 %v1645, 4294901760
    %1647 = vmatpush1.msra.mxu0 %v1646
    %1648 = vmatprep.subr.mxu0 0.0
    %v1649 = vand.u32 %v28, 4294901760
    %v1650 = vsub.f32 %v28, %v1649
    %v1651 = vand.u32 %v1650, 4294901760
    %1652 = vmatpush1.msra.mxu0 %v1651
    %1653 = vmatprep.subr.mxu0 0.0
    %v1654 = vand.u32 %v29, 4294901760
    %v1655 = vsub.f32 %v29, %v1654
    %v1656 = vand.u32 %v1655, 4294901760
    %1657 = vmatpush1.msra.mxu0 %v1656
    %1658 = vmatprep.subr.mxu0 0.0
    %v1659 = vand.u32 %v30, 4294901760
    %v1660 = vsub.f32 %v30, %v1659
    %v1661 = vand.u32 %v1660, 4294901760
    %1662 = vmatpush1.msra.mxu0 %v1661
    %1663 = vmatprep.subr.mxu0 0.0
    %v1664 = vand.u32 %v31, 4294901760
    %v1665 = vsub.f32 %v31, %v1664
    %v1666 = vand.u32 %v1665, 4294901760
    %1667 = vmatpush1.msra.mxu0 %v1666
    %1668 = vmatprep.subr.mxu0 0.0
    %v1669 = vand.u32 %v32, 4294901760
    %v1670 = vsub.f32 %v32, %v1669
    %v1671 = vand.u32 %v1670, 4294901760
    %1672 = vmatpush1.msra.mxu0 %v1671
    %1673 = vmatprep.subr.mxu0 0.0
    %v1674 = vand.u32 %v33, 4294901760
    %v1675 = vsub.f32 %v33, %v1674
    %v1676 = vand.u32 %v1675, 4294901760
    %1677 = vmatpush1.msra.mxu0 %v1676
    %1678 = vmatprep.subr.mxu0 0.0
    %v1679 = vand.u32 %v34, 4294901760
    %v1680 = vsub.f32 %v34, %v1679
    %v1681 = vand.u32 %v1680, 4294901760
    %1682 = vmatpush1.msra.mxu0 %v1681
    %1683 = vmatprep.subr.mxu0 0.0
    %1684 = vmatpush1.msra.mxu0 0.0
    %1685 = vmatprep.subr.mxu0 0.0
    %1686 = vmatpush1.msra.mxu0 0.0
    %1687 = vmatprep.subr.mxu0 0.0
    %1688 = vmatpush1.msra.mxu0 0.0
    %1689 = vmatprep.subr.mxu0 0.0
    %1690 = vmatpush1.msra.mxu0 0.0
    %1691 = vmatprep.subr.mxu0 0.0
    %1692 = vmatpush1.msra.mxu0 0.0
    %1693 = vmatprep.subr.mxu0 0.0
    %1694 = vmatpush1.msra.mxu0 0.0
    %1695 = vmatprep.subr.mxu0 0.0
    %1696 = vmatpush1.msra.mxu0 0.0
    %1697 = vmatprep.subr.mxu0 0.0
    %1698 = vmatpush1.msra.mxu0 0.0
    %1699 = vmatprep.subr.mxu0 0.0
    %1700 = vmatpush1.msra.mxu0 0.0
    %1701 = vmatprep.subr.mxu0 0.0
    %1702 = vmatpush1.msra.mxu0 0.0
    %1703 = vmatprep.subr.mxu0 0.0
    %1704 = vmatpush1.msra.mxu0 0.0
    %1705 = vmatprep.subr.mxu0 0.0
    %1706 = vmatpush1.msra.mxu0 0.0
    %1707 = vmatprep.subr.mxu0 0.0
    %1708 = vmatpush1.msra.mxu0 0.0
    %1709 = vmatprep.subr.mxu0 0.0
    %1710 = vmatpush1.msra.mxu0 0.0
    %1711 = vmatprep.subr.mxu0 0.0
    %1712 = vmatpush1.msra.mxu0 0.0
    %1713 = vmatprep.subr.mxu0 0.0
    %1714 = vmatpush1.msra.mxu0 0.0
    %1715 = vmatprep.subr.mxu0 0.0
    %1716 = vmatpush1.msra.mxu0 0.0
    %1717 = vmatprep.subr.mxu0 0.0
    %1718 = vmatpush1.msra.mxu0 0.0
    %1719 = vmatprep.subr.mxu0 0.0
    %1720 = vmatpush1.msra.mxu0 0.0
    %1721 = vmatprep.subr.mxu0 0.0
    %1722 = vmatpush1.msra.mxu0 0.0
    %1723 = vmatprep.subr.mxu0 0.0
    %1724 = vmatpush1.msra.mxu0 0.0
    %1725 = vmatprep.subr.mxu0 0.0
    %1726 = vmatpush1.msra.mxu0 0.0
    %1727 = vmatprep.subr.mxu0 0.0
    %1728 = vmatpush1.msra.mxu0 0.0
    %1729 = vmatprep.subr.mxu0 0.0
    %1730 = vmatpush1.msra.mxu0 0.0
    %1731 = vmatprep.mubr.f32.mxu0 0.0
    %v1732 = vand.u32 %v1244, 4294901760
    %1733 = vmatmul.mubr.f32.gmra.mrb[0].mxu0 %v1732
    %v1734 = vpop.f32.mrb[0].mxu0
    %v1735 = vadd.f32 %v1632, %v1734
    %v1736 = vpop.f32.mrb[0].mxu0
    %1737 = vmatprep.mubr.f32.mxu0 0.0
    %v1738 = vand.u32 %v1247, 4294901760
    %1739 = vmatmul.mubr.f32.gmra.mrb[0].mxu0 %v1738
    %v1740 = vpop.f32.mrb[0].mxu0
    %v1741 = vadd.f32 %v1640, %v1740
    %v1742 = vpop.f32.mrb[0].mxu0
    %1743 = vdwg.mxu0
    %1744 = vmatprep.subr.mxu0 0.0
    %v1745 = vand.u32 %v27, 4294901760
    %1746 = vmatpush1.msra.mxu0 %v1745
    %1747 = vmatprep.subr.mxu0 0.0
    %v1748 = vand.u32 %v28, 4294901760
    %1749 = vmatpush1.msra.mxu0 %v1748
    %1750 = vmatprep.subr.mxu0 0.0
    %v1751 = vand.u32 %v29, 4294901760
    %1752 = vmatpush1.msra.mxu0 %v1751
    %1753 = vmatprep.subr.mxu0 0.0
    %v1754 = vand.u32 %v30, 4294901760
    %1755 = vmatpush1.msra.mxu0 %v1754
    %1756 = vmatprep.subr.mxu0 0.0
    %v1757 = vand.u32 %v31, 4294901760
    %1758 = vmatpush1.msra.mxu0 %v1757
    %1759 = vmatprep.subr.mxu0 0.0
    %v1760 = vand.u32 %v32, 4294901760
    %1761 = vmatpush1.msra.mxu0 %v1760
    %1762 = vmatprep.subr.mxu0 0.0
    %v1763 = vand.u32 %v33, 4294901760
    %1764 = vmatpush1.msra.mxu0 %v1763
    %1765 = vmatprep.subr.mxu0 0.0
    %v1766 = vand.u32 %v34, 4294901760
    %1767 = vmatpush1.msra.mxu0 %v1766
    %1768 = vmatprep.subr.mxu0 0.0
    %1769 = vmatpush1.msra.mxu0 0.0
    %1770 = vmatprep.subr.mxu0 0.0
    %1771 = vmatpush1.msra.mxu0 0.0
    %1772 = vmatprep.subr.mxu0 0.0
    %1773 = vmatpush1.msra.mxu0 0.0
    %1774 = vmatprep.subr.mxu0 0.0
    %1775 = vmatpush1.msra.mxu0 0.0
    %1776 = vmatprep.subr.mxu0 0.0
    %1777 = vmatpush1.msra.mxu0 0.0
    %1778 = vmatprep.subr.mxu0 0.0
    %1779 = vmatpush1.msra.mxu0 0.0
    %1780 = vmatprep.subr.mxu0 0.0
    %1781 = vmatpush1.msra.mxu0 0.0
    %1782 = vmatprep.subr.mxu0 0.0
    %1783 = vmatpush1.msra.mxu0 0.0
    %1784 = vmatprep.subr.mxu0 0.0
    %1785 = vmatpush1.msra.mxu0 0.0
    %1786 = vmatprep.subr.mxu0 0.0
    %1787 = vmatpush1.msra.mxu0 0.0
    %1788 = vmatprep.subr.mxu0 0.0
    %1789 = vmatpush1.msra.mxu0 0.0
    %1790 = vmatprep.subr.mxu0 0.0
    %1791 = vmatpush1.msra.mxu0 0.0
    %1792 = vmatprep.subr.mxu0 0.0
    %1793 = vmatpush1.msra.mxu0 0.0
    %1794 = vmatprep.subr.mxu0 0.0
    %1795 = vmatpush1.msra.mxu0 0.0
    %1796 = vmatprep.subr.mxu0 0.0
    %1797 = vmatpush1.msra.mxu0 0.0
    %1798 = vmatprep.subr.mxu0 0.0
    %1799 = vmatpush1.msra.mxu0 0.0
    %1800 = vmatprep.subr.mxu0 0.0
    %1801 = vmatpush1.msra.mxu0 0.0
    %1802 = vmatprep.subr.mxu0 0.0
    %1803 = vmatpush1.msra.mxu0 0.0
    %1804 = vmatprep.subr.mxu0 0.0
    %1805 = vmatpush1.msra.mxu0 0.0
    %1806 = vmatprep.subr.mxu0 0.0
    %1807 = vmatpush1.msra.mxu0 0.0
    %1808 = vmatprep.subr.mxu0 0.0
    %1809 = vmatpush1.msra.mxu0 0.0
    %1810 = vmatprep.subr.mxu0 0.0
    %1811 = vmatpush1.msra.mxu0 0.0
    %1812 = vmatprep.subr.mxu0 0.0
    %1813 = vmatpush1.msra.mxu0 0.0
    %1814 = vmatprep.subr.mxu0 0.0
    %1815 = vmatpush1.msra.mxu0 0.0
    %1816 = vmatprep.mubr.f32.mxu0 0.0
    %v1817 = vand.u32 %v1244, 4294901760
    %1818 = vmatmul.mubr.f32.gmra.mrb[0].mxu0 %v1817
    %v1819 = vpop.f32.mrb[0].mxu0
    %v1820 = vadd.f32 %v1735, %v1819
    %v1821 = vpop.f32.mrb[0].mxu0
    %1822 = vmatprep.mubr.f32.mxu0 0.0
    %v1823 = vand.u32 %v1247, 4294901760
    %1824 = vmatmul.mubr.f32.gmra.mrb[0].mxu0 %v1823
    %v1825 = vpop.f32.mrb[0].mxu0
    %v1826 = vadd.f32 %v1741, %v1825
    %v1827 = vpop.f32.mrb[0].mxu0
    %1828 = vdwg.mxu0
    %v1829 = vmul.f32 %v1820, %v1820
    %v1830 = vmul.f32 %v1826, %v1826
    %v1831 = vsel %vm646, %v1829, 0.0
    %1832 = vadd.xlane.f32.xlu0 %v1831
    %v1833 = vpop.xlane.xlu0 %1832
    %v1834 = vsel %vm646, %v1830, 0.0
    %1835 = vadd.xlane.f32.xlu0 %v1834
    %v1836 = vpop.xlane.xlu0 %1835
    %v1837 = vrsqrt.pop %v1833
    %v1838 = vmul.f32 %v1833, %v1837
    %vm1839 = vcmp.eq.f32.partialorder %v1833, inf
    %v1840 = vsel %vm1839, %v1833, %v1838
    %vm1841 = vcmp.eq.f32.partialorder %v1833, 0.0
    %v1842 = vand.u32 %v1833, 2147483648
    %v1843 = vsel %vm1841, %v1842, %v1840
    %v1844 = vrsqrt.pop %v1836
    %v1845 = vmul.f32 %v1836, %v1844
    %vm1846 = vcmp.eq.f32.partialorder %v1836, inf
    %v1847 = vsel %vm1846, %v1836, %v1845
    %vm1848 = vcmp.eq.f32.partialorder %v1836, 0.0
    %v1849 = vand.u32 %v1836, 2147483648
    %v1850 = vsel %vm1848, %v1849, %v1847
    %vm1851 = vcmp.gt.f32.partialorder %v1843, 1.0
    %vm1852 = vcmp.gt.f32.partialorder %v1850, 1.0
    %v1853 = vadd.f32 %v1843, 1e-07
    %v1854 = vadd.f32 %v1850, 1e-07
    %v1855 = vrcp.pop %v1853
    %v1856 = vmul.f32 1.0, %v1855
    %v1857 = vrcp.pop %v1854
    %v1858 = vmul.f32 1.0, %v1857
    %v1859 = vsel %vm1851, %v1856, 1.0
    %v1860 = vsel %vm1852, %v1858, 1.0
    %v1861 = vmul.f32 %v1859, %v1229
    %v1862 = vmul.f32 %v1860, %v1230
    %v1864 = vsel %vm646, %v1820, 0
    %v1867 = vsel %vm646, %v1826, 0
    %1869 = vmatprep.subr.mxu0 0.0
    %v1870 = vand.u32 %v35, 4294901760
    %1871 = vmatpush1.msra.mxu0 %v1870
    %1872 = vmatprep.subr.mxu0 0.0
    %v1873 = vand.u32 %v36, 4294901760
    %1874 = vmatpush1.msra.mxu0 %v1873
    %1875 = vmatprep.subr.mxu0 0.0
    %v1876 = vand.u32 %v37, 4294901760
    %1877 = vmatpush1.msra.mxu0 %v1876
    %1878 = vmatprep.subr.mxu0 0.0
    %v1879 = vand.u32 %v38, 4294901760
    %1880 = vmatpush1.msra.mxu0 %v1879
    %1881 = vmatprep.subr.mxu0 0.0
    %1882 = vmatpush1.msra.mxu0 0.0
    %1883 = vmatprep.subr.mxu0 0.0
    %1884 = vmatpush1.msra.mxu0 0.0
    %1885 = vmatprep.subr.mxu0 0.0
    %1886 = vmatpush1.msra.mxu0 0.0
    %1887 = vmatprep.subr.mxu0 0.0
    %1888 = vmatpush1.msra.mxu0 0.0
    %1889 = vmatprep.subr.mxu0 0.0
    %1890 = vmatpush1.msra.mxu0 0.0
    %1891 = vmatprep.subr.mxu0 0.0
    %1892 = vmatpush1.msra.mxu0 0.0
    %1893 = vmatprep.subr.mxu0 0.0
    %1894 = vmatpush1.msra.mxu0 0.0
    %1895 = vmatprep.subr.mxu0 0.0
    %1896 = vmatpush1.msra.mxu0 0.0
    %1897 = vmatprep.subr.mxu0 0.0
    %1898 = vmatpush1.msra.mxu0 0.0
    %1899 = vmatprep.subr.mxu0 0.0
    %1900 = vmatpush1.msra.mxu0 0.0
    %1901 = vmatprep.subr.mxu0 0.0
    %1902 = vmatpush1.msra.mxu0 0.0
    %1903 = vmatprep.subr.mxu0 0.0
    %1904 = vmatpush1.msra.mxu0 0.0
    %1905 = vmatprep.subr.mxu0 0.0
    %1906 = vmatpush1.msra.mxu0 0.0
    %1907 = vmatprep.subr.mxu0 0.0
    %1908 = vmatpush1.msra.mxu0 0.0
    %1909 = vmatprep.subr.mxu0 0.0
    %1910 = vmatpush1.msra.mxu0 0.0
    %1911 = vmatprep.subr.mxu0 0.0
    %1912 = vmatpush1.msra.mxu0 0.0
    %1913 = vmatprep.subr.mxu0 0.0
    %1914 = vmatpush1.msra.mxu0 0.0
    %1915 = vmatprep.subr.mxu0 0.0
    %1916 = vmatpush1.msra.mxu0 0.0
    %1917 = vmatprep.subr.mxu0 0.0
    %1918 = vmatpush1.msra.mxu0 0.0
    %1919 = vmatprep.subr.mxu0 0.0
    %1920 = vmatpush1.msra.mxu0 0.0
    %1921 = vmatprep.subr.mxu0 0.0
    %1922 = vmatpush1.msra.mxu0 0.0
    %1923 = vmatprep.subr.mxu0 0.0
    %1924 = vmatpush1.msra.mxu0 0.0
    %1925 = vmatprep.subr.mxu0 0.0
    %1926 = vmatpush1.msra.mxu0 0.0
    %1927 = vmatprep.subr.mxu0 0.0
    %1928 = vmatpush1.msra.mxu0 0.0
    %1929 = vmatprep.subr.mxu0 0.0
    %1930 = vmatpush1.msra.mxu0 0.0
    %1931 = vmatprep.subr.mxu0 0.0
    %1932 = vmatpush1.msra.mxu0 0.0
    %1933 = vmatprep.subr.mxu0 0.0
    %1934 = vmatpush1.msra.mxu0 0.0
    %1935 = vmatprep.subr.mxu0 0.0
    %1936 = vmatpush1.msra.mxu0 0.0
    %1937 = vmatprep.mubr.f32.mxu0 0.0
    %v1938 = vand.u32 %v1864, 4294901760
    %v1939 = vsub.f32 %v1864, %v1938
    %v1940 = vand.u32 %v1939, 4294901760
    %v1941 = vsub.f32 %v1939, %v1940
    %v1942 = vand.u32 %v1941, 4294901760
    %1943 = vmatmul.mubr.f32.gmra.mrb[0].mxu0 %v1942
    %v1944 = vpop.f32.mrb[0].mxu0
    %v1945 = vadd.f32 0.0, %v1944
    %v1946 = vpop.f32.mrb[0].mxu0
    %1947 = vmatprep.mubr.f32.mxu0 0.0
    %v1948 = vand.u32 %v1867, 4294901760
    %v1949 = vsub.f32 %v1867, %v1948
    %v1950 = vand.u32 %v1949, 4294901760
    %v1951 = vsub.f32 %v1949, %v1950
    %v1952 = vand.u32 %v1951, 4294901760
    %1953 = vmatmul.mubr.f32.gmra.mrb[0].mxu0 %v1952
    %v1954 = vpop.f32.mrb[0].mxu0
    %v1955 = vadd.f32 0.0, %v1954
    %v1956 = vpop.f32.mrb[0].mxu0
    %1957 = vdwg.mxu0
    %1958 = vmatprep.subr.mxu0 0.0
    %v1959 = vand.u32 %v35, 4294901760
    %v1960 = vsub.f32 %v35, %v1959
    %v1961 = vand.u32 %v1960, 4294901760
    %v1962 = vsub.f32 %v1960, %v1961
    %v1963 = vand.u32 %v1962, 4294901760
    %1964 = vmatpush1.msra.mxu0 %v1963
    %1965 = vmatprep.subr.mxu0 0.0
    %v1966 = vand.u32 %v36, 4294901760
    %v1967 = vsub.f32 %v36, %v1966
    %v1968 = vand.u32 %v1967, 4294901760
    %v1969 = vsub.f32 %v1967, %v1968
    %v1970 = vand.u32 %v1969, 4294901760
    %1971 = vmatpush1.msra.mxu0 %v1970
    %1972 = vmatprep.subr.mxu0 0.0
    %v1973 = vand.u32 %v37, 4294901760
    %v1974 = vsub.f32 %v37, %v1973
    %v1975 = vand.u32 %v1974, 4294901760
    %v1976 = vsub.f32 %v1974, %v1975
    %v1977 = vand.u32 %v1976, 4294901760
    %1978 = vmatpush1.msra.mxu0 %v1977
    %1979 = vmatprep.subr.mxu0 0.0
    %v1980 = vand.u32 %v38, 4294901760
    %v1981 = vsub.f32 %v38, %v1980
    %v1982 = vand.u32 %v1981, 4294901760
    %v1983 = vsub.f32 %v1981, %v1982
    %v1984 = vand.u32 %v1983, 4294901760
    %1985 = vmatpush1.msra.mxu0 %v1984
    %1986 = vmatprep.subr.mxu0 0.0
    %1987 = vmatpush1.msra.mxu0 0.0
    %1988 = vmatprep.subr.mxu0 0.0
    %1989 = vmatpush1.msra.mxu0 0.0
    %1990 = vmatprep.subr.mxu0 0.0
    %1991 = vmatpush1.msra.mxu0 0.0
    %1992 = vmatprep.subr.mxu0 0.0
    %1993 = vmatpush1.msra.mxu0 0.0
    %1994 = vmatprep.subr.mxu0 0.0
    %1995 = vmatpush1.msra.mxu0 0.0
    %1996 = vmatprep.subr.mxu0 0.0
    %1997 = vmatpush1.msra.mxu0 0.0
    %1998 = vmatprep.subr.mxu0 0.0
    %1999 = vmatpush1.msra.mxu0 0.0
    %2000 = vmatprep.subr.mxu0 0.0
    %2001 = vmatpush1.msra.mxu0 0.0
    %2002 = vmatprep.subr.mxu0 0.0
    %2003 = vmatpush1.msra.mxu0 0.0
    %2004 = vmatprep.subr.mxu0 0.0
    %2005 = vmatpush1.msra.mxu0 0.0
    %2006 = vmatprep.subr.mxu0 0.0
    %2007 = vmatpush1.msra.mxu0 0.0
    %2008 = vmatprep.subr.mxu0 0.0
    %2009 = vmatpush1.msra.mxu0 0.0
    %2010 = vmatprep.subr.mxu0 0.0
    %2011 = vmatpush1.msra.mxu0 0.0
    %2012 = vmatprep.subr.mxu0 0.0
    %2013 = vmatpush1.msra.mxu0 0.0
    %2014 = vmatprep.subr.mxu0 0.0
    %2015 = vmatpush1.msra.mxu0 0.0
    %2016 = vmatprep.subr.mxu0 0.0
    %2017 = vmatpush1.msra.mxu0 0.0
    %2018 = vmatprep.subr.mxu0 0.0
    %2019 = vmatpush1.msra.mxu0 0.0
    %2020 = vmatprep.subr.mxu0 0.0
    %2021 = vmatpush1.msra.mxu0 0.0
    %2022 = vmatprep.subr.mxu0 0.0
    %2023 = vmatpush1.msra.mxu0 0.0
    %2024 = vmatprep.subr.mxu0 0.0
    %2025 = vmatpush1.msra.mxu0 0.0
    %2026 = vmatprep.subr.mxu0 0.0
    %2027 = vmatpush1.msra.mxu0 0.0
    %2028 = vmatprep.subr.mxu0 0.0
    %2029 = vmatpush1.msra.mxu0 0.0
    %2030 = vmatprep.subr.mxu0 0.0
    %2031 = vmatpush1.msra.mxu0 0.0
    %2032 = vmatprep.subr.mxu0 0.0
    %2033 = vmatpush1.msra.mxu0 0.0
    %2034 = vmatprep.subr.mxu0 0.0
    %2035 = vmatpush1.msra.mxu0 0.0
    %2036 = vmatprep.subr.mxu0 0.0
    %2037 = vmatpush1.msra.mxu0 0.0
    %2038 = vmatprep.subr.mxu0 0.0
    %2039 = vmatpush1.msra.mxu0 0.0
    %2040 = vmatprep.subr.mxu0 0.0
    %2041 = vmatpush1.msra.mxu0 0.0
    %2042 = vmatprep.mubr.f32.mxu0 0.0
    %v2043 = vand.u32 %v1864, 4294901760
    %2044 = vmatmul.mubr.f32.gmra.mrb[0].mxu0 %v2043
    %v2045 = vpop.f32.mrb[0].mxu0
    %v2046 = vadd.f32 %v1945, %v2045
    %v2047 = vpop.f32.mrb[0].mxu0
    %2048 = vmatprep.mubr.f32.mxu0 0.0
    %v2049 = vand.u32 %v1867, 4294901760
    %2050 = vmatmul.mubr.f32.gmra.mrb[0].mxu0 %v2049
    %v2051 = vpop.f32.mrb[0].mxu0
    %v2052 = vadd.f32 %v1955, %v2051
    %v2053 = vpop.f32.mrb[0].mxu0
    %2054 = vdwg.mxu0
    %2055 = vmatprep.subr.mxu0 0.0
    %v2056 = vand.u32 %v35, 4294901760
    %v2057 = vsub.f32 %v35, %v2056
    %2058 = vmatpush1.msra.mxu0 %v2057
    %2059 = vmatprep.subr.mxu0 0.0
    %v2060 = vand.u32 %v36, 4294901760
    %v2061 = vsub.f32 %v36, %v2060
    %2062 = vmatpush1.msra.mxu0 %v2061
    %2063 = vmatprep.subr.mxu0 0.0
    %v2064 = vand.u32 %v37, 4294901760
    %v2065 = vsub.f32 %v37, %v2064
    %2066 = vmatpush1.msra.mxu0 %v2065
    %2067 = vmatprep.subr.mxu0 0.0
    %v2068 = vand.u32 %v38, 4294901760
    %v2069 = vsub.f32 %v38, %v2068
    %2070 = vmatpush1.msra.mxu0 %v2069
    %2071 = vmatprep.subr.mxu0 0.0
    %2072 = vmatpush1.msra.mxu0 0.0
    %2073 = vmatprep.subr.mxu0 0.0
    %2074 = vmatpush1.msra.mxu0 0.0
    %2075 = vmatprep.subr.mxu0 0.0
    %2076 = vmatpush1.msra.mxu0 0.0
    %2077 = vmatprep.subr.mxu0 0.0
    %2078 = vmatpush1.msra.mxu0 0.0
    %2079 = vmatprep.subr.mxu0 0.0
    %2080 = vmatpush1.msra.mxu0 0.0
    %2081 = vmatprep.subr.mxu0 0.0
    %2082 = vmatpush1.msra.mxu0 0.0
    %2083 = vmatprep.subr.mxu0 0.0
    %2084 = vmatpush1.msra.mxu0 0.0
    %2085 = vmatprep.subr.mxu0 0.0
    %2086 = vmatpush1.msra.mxu0 0.0
    %2087 = vmatprep.subr.mxu0 0.0
    %2088 = vmatpush1.msra.mxu0 0.0
    %2089 = vmatprep.subr.mxu0 0.0
    %2090 = vmatpush1.msra.mxu0 0.0
    %2091 = vmatprep.subr.mxu0 0.0
    %2092 = vmatpush1.msra.mxu0 0.0
    %2093 = vmatprep.subr.mxu0 0.0
    %2094 = vmatpush1.msra.mxu0 0.0
    %2095 = vmatprep.subr.mxu0 0.0
    %2096 = vmatpush1.msra.mxu0 0.0
    %2097 = vmatprep.subr.mxu0 0.0
    %2098 = vmatpush1.msra.mxu0 0.0
    %2099 = vmatprep.subr.mxu0 0.0
    %2100 = vmatpush1.msra.mxu0 0.0
    %2101 = vmatprep.subr.mxu0 0.0
    %2102 = vmatpush1.msra.mxu0 0.0
    %2103 = vmatprep.subr.mxu0 0.0
    %2104 = vmatpush1.msra.mxu0 0.0
    %2105 = vmatprep.subr.mxu0 0.0
    %2106 = vmatpush1.msra.mxu0 0.0
    %2107 = vmatprep.subr.mxu0 0.0
    %2108 = vmatpush1.msra.mxu0 0.0
    %2109 = vmatprep.subr.mxu0 0.0
    %2110 = vmatpush1.msra.mxu0 0.0
    %2111 = vmatprep.subr.mxu0 0.0
    %2112 = vmatpush1.msra.mxu0 0.0
    %2113 = vmatprep.subr.mxu0 0.0
    %2114 = vmatpush1.msra.mxu0 0.0
    %2115 = vmatprep.subr.mxu0 0.0
    %2116 = vmatpush1.msra.mxu0 0.0
    %2117 = vmatprep.subr.mxu0 0.0
    %2118 = vmatpush1.msra.mxu0 0.0
    %2119 = vmatprep.subr.mxu0 0.0
    %2120 = vmatpush1.msra.mxu0 0.0
    %2121 = vmatprep.subr.mxu0 0.0
    %2122 = vmatpush1.msra.mxu0 0.0
    %2123 = vmatprep.subr.mxu0 0.0
    %2124 = vmatpush1.msra.mxu0 0.0
    %2125 = vmatprep.subr.mxu0 0.0
    %2126 = vmatpush1.msra.mxu0 0.0
    %2127 = vmatprep.mubr.f32.mxu0 0.0
    %v2128 = vand.u32 %v1864, 4294901760
    %v2129 = vsub.f32 %v1864, %v2128
    %2130 = vmatmul.mubr.f32.gmra.mrb[0].mxu0 %v2129
    %v2131 = vpop.f32.mrb[0].mxu0
    %v2132 = vadd.f32 %v2046, %v2131
    %v2133 = vpop.f32.mrb[0].mxu0
    %2134 = vmatprep.mubr.f32.mxu0 0.0
    %v2135 = vand.u32 %v1867, 4294901760
    %v2136 = vsub.f32 %v1867, %v2135
    %2137 = vmatmul.mubr.f32.gmra.mrb[0].mxu0 %v2136
    %v2138 = vpop.f32.mrb[0].mxu0
    %v2139 = vadd.f32 %v2052, %v2138
    %v2140 = vpop.f32.mrb[0].mxu0
    %2141 = vdwg.mxu0
    %2142 = vmatprep.subr.mxu0 0.0
    %v2143 = vand.u32 %v35, 4294901760
    %2144 = vmatpush1.msra.mxu0 %v2143
    %2145 = vmatprep.subr.mxu0 0.0
    %v2146 = vand.u32 %v36, 4294901760
    %2147 = vmatpush1.msra.mxu0 %v2146
    %2148 = vmatprep.subr.mxu0 0.0
    %v2149 = vand.u32 %v37, 4294901760
    %2150 = vmatpush1.msra.mxu0 %v2149
    %2151 = vmatprep.subr.mxu0 0.0
    %v2152 = vand.u32 %v38, 4294901760
    %2153 = vmatpush1.msra.mxu0 %v2152
    %2154 = vmatprep.subr.mxu0 0.0
    %2155 = vmatpush1.msra.mxu0 0.0
    %2156 = vmatprep.subr.mxu0 0.0
    %2157 = vmatpush1.msra.mxu0 0.0
    %2158 = vmatprep.subr.mxu0 0.0
    %2159 = vmatpush1.msra.mxu0 0.0
    %2160 = vmatprep.subr.mxu0 0.0
    %2161 = vmatpush1.msra.mxu0 0.0
    %2162 = vmatprep.subr.mxu0 0.0
    %2163 = vmatpush1.msra.mxu0 0.0
    %2164 = vmatprep.subr.mxu0 0.0
    %2165 = vmatpush1.msra.mxu0 0.0
    %2166 = vmatprep.subr.mxu0 0.0
    %2167 = vmatpush1.msra.mxu0 0.0
    %2168 = vmatprep.subr.mxu0 0.0
    %2169 = vmatpush1.msra.mxu0 0.0
    %2170 = vmatprep.subr.mxu0 0.0
    %2171 = vmatpush1.msra.mxu0 0.0
    %2172 = vmatprep.subr.mxu0 0.0
    %2173 = vmatpush1.msra.mxu0 0.0
    %2174 = vmatprep.subr.mxu0 0.0
    %2175 = vmatpush1.msra.mxu0 0.0
    %2176 = vmatprep.subr.mxu0 0.0
    %2177 = vmatpush1.msra.mxu0 0.0
    %2178 = vmatprep.subr.mxu0 0.0
    %2179 = vmatpush1.msra.mxu0 0.0
    %2180 = vmatprep.subr.mxu0 0.0
    %2181 = vmatpush1.msra.mxu0 0.0
    %2182 = vmatprep.subr.mxu0 0.0
    %2183 = vmatpush1.msra.mxu0 0.0
    %2184 = vmatprep.subr.mxu0 0.0
    %2185 = vmatpush1.msra.mxu0 0.0
    %2186 = vmatprep.subr.mxu0 0.0
    %2187 = vmatpush1.msra.mxu0 0.0
    %2188 = vmatprep.subr.mxu0 0.0
    %2189 = vmatpush1.msra.mxu0 0.0
    %2190 = vmatprep.subr.mxu0 0.0
    %2191 = vmatpush1.msra.mxu0 0.0
    %2192 = vmatprep.subr.mxu0 0.0
    %2193 = vmatpush1.msra.mxu0 0.0
    %2194 = vmatprep.subr.mxu0 0.0
    %2195 = vmatpush1.msra.mxu0 0.0
    %2196 = vmatprep.subr.mxu0 0.0
    %2197 = vmatpush1.msra.mxu0 0.0
    %2198 = vmatprep.subr.mxu0 0.0
    %2199 = vmatpush1.msra.mxu0 0.0
    %2200 = vmatprep.subr.mxu0 0.0
    %2201 = vmatpush1.msra.mxu0 0.0
    %2202 = vmatprep.subr.mxu0 0.0
    %2203 = vmatpush1.msra.mxu0 0.0
    %2204 = vmatprep.subr.mxu0 0.0
    %2205 = vmatpush1.msra.mxu0 0.0
    %2206 = vmatprep.subr.mxu0 0.0
    %2207 = vmatpush1.msra.mxu0 0.0
    %2208 = vmatprep.subr.mxu0 0.0
    %2209 = vmatpush1.msra.mxu0 0.0
    %2210 = vmatprep.mubr.f32.mxu0 0.0
    %v2211 = vand.u32 %v1864, 4294901760
    %v2212 = vsub.f32 %v1864, %v2211
    %v2213 = vand.u32 %v2212, 4294901760
    %2214 = vmatmul.mubr.f32.gmra.mrb[0].mxu0 %v2213
    %v2215 = vpop.f32.mrb[0].mxu0
    %v2216 = vadd.f32 %v2132, %v2215
    %v2217 = vpop.f32.mrb[0].mxu0
    %2218 = vmatprep.mubr.f32.mxu0 0.0
    %v2219 = vand.u32 %v1867, 4294901760
    %v2220 = vsub.f32 %v1867, %v2219
    %v2221 = vand.u32 %v2220, 4294901760
    %2222 = vmatmul.mubr.f32.gmra.mrb[0].mxu0 %v2221
    %v2223 = vpop.f32.mrb[0].mxu0
    %v2224 = vadd.f32 %v2139, %v2223
    %v2225 = vpop.f32.mrb[0].mxu0
    %2226 = vdwg.mxu0
    %2227 = vmatprep.subr.mxu0 0.0
    %v2228 = vand.u32 %v35, 4294901760
    %v2229 = vsub.f32 %v35, %v2228
    %v2230 = vand.u32 %v2229, 4294901760
    %2231 = vmatpush1.msra.mxu0 %v2230
    %2232 = vmatprep.subr.mxu0 0.0
    %v2233 = vand.u32 %v36, 4294901760
    %v2234 = vsub.f32 %v36, %v2233
    %v2235 = vand.u32 %v2234, 4294901760
    %2236 = vmatpush1.msra.mxu0 %v2235
    %2237 = vmatprep.subr.mxu0 0.0
    %v2238 = vand.u32 %v37, 4294901760
    %v2239 = vsub.f32 %v37, %v2238
    %v2240 = vand.u32 %v2239, 4294901760
    %2241 = vmatpush1.msra.mxu0 %v2240
    %2242 = vmatprep.subr.mxu0 0.0
    %v2243 = vand.u32 %v38, 4294901760
    %v2244 = vsub.f32 %v38, %v2243
    %v2245 = vand.u32 %v2244, 4294901760
    %2246 = vmatpush1.msra.mxu0 %v2245
    %2247 = vmatprep.subr.mxu0 0.0
    %2248 = vmatpush1.msra.mxu0 0.0
    %2249 = vmatprep.subr.mxu0 0.0
    %2250 = vmatpush1.msra.mxu0 0.0
    %2251 = vmatprep.subr.mxu0 0.0
    %2252 = vmatpush1.msra.mxu0 0.0
    %2253 = vmatprep.subr.mxu0 0.0
    %2254 = vmatpush1.msra.mxu0 0.0
    %2255 = vmatprep.subr.mxu0 0.0
    %2256 = vmatpush1.msra.mxu0 0.0
    %2257 = vmatprep.subr.mxu0 0.0
    %2258 = vmatpush1.msra.mxu0 0.0
    %2259 = vmatprep.subr.mxu0 0.0
    %2260 = vmatpush1.msra.mxu0 0.0
    %2261 = vmatprep.subr.mxu0 0.0
    %2262 = vmatpush1.msra.mxu0 0.0
    %2263 = vmatprep.subr.mxu0 0.0
    %2264 = vmatpush1.msra.mxu0 0.0
    %2265 = vmatprep.subr.mxu0 0.0
    %2266 = vmatpush1.msra.mxu0 0.0
    %2267 = vmatprep.subr.mxu0 0.0
    %2268 = vmatpush1.msra.mxu0 0.0
    %2269 = vmatprep.subr.mxu0 0.0
    %2270 = vmatpush1.msra.mxu0 0.0
    %2271 = vmatprep.subr.mxu0 0.0
    %2272 = vmatpush1.msra.mxu0 0.0
    %2273 = vmatprep.subr.mxu0 0.0
    %2274 = vmatpush1.msra.mxu0 0.0
    %2275 = vmatprep.subr.mxu0 0.0
    %2276 = vmatpush1.msra.mxu0 0.0
    %2277 = vmatprep.subr.mxu0 0.0
    %2278 = vmatpush1.msra.mxu0 0.0
    %2279 = vmatprep.subr.mxu0 0.0
    %2280 = vmatpush1.msra.mxu0 0.0
    %2281 = vmatprep.subr.mxu0 0.0
    %2282 = vmatpush1.msra.mxu0 0.0
    %2283 = vmatprep.subr.mxu0 0.0
    %2284 = vmatpush1.msra.mxu0 0.0
    %2285 = vmatprep.subr.mxu0 0.0
    %2286 = vmatpush1.msra.mxu0 0.0
    %2287 = vmatprep.subr.mxu0 0.0
    %2288 = vmatpush1.msra.mxu0 0.0
    %2289 = vmatprep.subr.mxu0 0.0
    %2290 = vmatpush1.msra.mxu0 0.0
    %2291 = vmatprep.subr.mxu0 0.0
    %2292 = vmatpush1.msra.mxu0 0.0
    %2293 = vmatprep.subr.mxu0 0.0
    %2294 = vmatpush1.msra.mxu0 0.0
    %2295 = vmatprep.subr.mxu0 0.0
    %2296 = vmatpush1.msra.mxu0 0.0
    %2297 = vmatprep.subr.mxu0 0.0
    %2298 = vmatpush1.msra.mxu0 0.0
    %2299 = vmatprep.subr.mxu0 0.0
    %2300 = vmatpush1.msra.mxu0 0.0
    %2301 = vmatprep.subr.mxu0 0.0
    %2302 = vmatpush1.msra.mxu0 0.0
    %2303 = vmatprep.mubr.f32.mxu0 0.0
    %v2304 = vand.u32 %v1864, 4294901760
    %2305 = vmatmul.mubr.f32.gmra.mrb[0].mxu0 %v2304
    %v2306 = vpop.f32.mrb[0].mxu0
    %v2307 = vadd.f32 %v2216, %v2306
    %v2308 = vpop.f32.mrb[0].mxu0
    %2309 = vmatprep.mubr.f32.mxu0 0.0
    %v2310 = vand.u32 %v1867, 4294901760
    %2311 = vmatmul.mubr.f32.gmra.mrb[0].mxu0 %v2310
    %v2312 = vpop.f32.mrb[0].mxu0
    %v2313 = vadd.f32 %v2224, %v2312
    %v2314 = vpop.f32.mrb[0].mxu0
    %2315 = vdwg.mxu0
    %2316 = vmatprep.subr.mxu0 0.0
    %v2317 = vand.u32 %v35, 4294901760
    %2318 = vmatpush1.msra.mxu0 %v2317
    %2319 = vmatprep.subr.mxu0 0.0
    %v2320 = vand.u32 %v36, 4294901760
    %2321 = vmatpush1.msra.mxu0 %v2320
    %2322 = vmatprep.subr.mxu0 0.0
    %v2323 = vand.u32 %v37, 4294901760
    %2324 = vmatpush1.msra.mxu0 %v2323
    %2325 = vmatprep.subr.mxu0 0.0
    %v2326 = vand.u32 %v38, 4294901760
    %2327 = vmatpush1.msra.mxu0 %v2326
    %2328 = vmatprep.subr.mxu0 0.0
    %2329 = vmatpush1.msra.mxu0 0.0
    %2330 = vmatprep.subr.mxu0 0.0
    %2331 = vmatpush1.msra.mxu0 0.0
    %2332 = vmatprep.subr.mxu0 0.0
    %2333 = vmatpush1.msra.mxu0 0.0
    %2334 = vmatprep.subr.mxu0 0.0
    %2335 = vmatpush1.msra.mxu0 0.0
    %2336 = vmatprep.subr.mxu0 0.0
    %2337 = vmatpush1.msra.mxu0 0.0
    %2338 = vmatprep.subr.mxu0 0.0
    %2339 = vmatpush1.msra.mxu0 0.0
    %2340 = vmatprep.subr.mxu0 0.0
    %2341 = vmatpush1.msra.mxu0 0.0
    %2342 = vmatprep.subr.mxu0 0.0
    %2343 = vmatpush1.msra.mxu0 0.0
    %2344 = vmatprep.subr.mxu0 0.0
    %2345 = vmatpush1.msra.mxu0 0.0
    %2346 = vmatprep.subr.mxu0 0.0
    %2347 = vmatpush1.msra.mxu0 0.0
    %2348 = vmatprep.subr.mxu0 0.0
    %2349 = vmatpush1.msra.mxu0 0.0
    %2350 = vmatprep.subr.mxu0 0.0
    %2351 = vmatpush1.msra.mxu0 0.0
    %2352 = vmatprep.subr.mxu0 0.0
    %2353 = vmatpush1.msra.mxu0 0.0
    %2354 = vmatprep.subr.mxu0 0.0
    %2355 = vmatpush1.msra.mxu0 0.0
    %2356 = vmatprep.subr.mxu0 0.0
    %2357 = vmatpush1.msra.mxu0 0.0
    %2358 = vmatprep.subr.mxu0 0.0
    %2359 = vmatpush1.msra.mxu0 0.0
    %2360 = vmatprep.subr.mxu0 0.0
    %2361 = vmatpush1.msra.mxu0 0.0
    %2362 = vmatprep.subr.mxu0 0.0
    %2363 = vmatpush1.msra.mxu0 0.0
    %2364 = vmatprep.subr.mxu0 0.0
    %2365 = vmatpush1.msra.mxu0 0.0
    %2366 = vmatprep.subr.mxu0 0.0
    %2367 = vmatpush1.msra.mxu0 0.0
    %2368 = vmatprep.subr.mxu0 0.0
    %2369 = vmatpush1.msra.mxu0 0.0
    %2370 = vmatprep.subr.mxu0 0.0
    %2371 = vmatpush1.msra.mxu0 0.0
    %2372 = vmatprep.subr.mxu0 0.0
    %2373 = vmatpush1.msra.mxu0 0.0
    %2374 = vmatprep.subr.mxu0 0.0
    %2375 = vmatpush1.msra.mxu0 0.0
    %2376 = vmatprep.subr.mxu0 0.0
    %2377 = vmatpush1.msra.mxu0 0.0
    %2378 = vmatprep.subr.mxu0 0.0
    %2379 = vmatpush1.msra.mxu0 0.0
    %2380 = vmatprep.subr.mxu0 0.0
    %2381 = vmatpush1.msra.mxu0 0.0
    %2382 = vmatprep.subr.mxu0 0.0
    %2383 = vmatpush1.msra.mxu0 0.0
    %2384 = vmatprep.mubr.f32.mxu0 0.0
    %v2385 = vand.u32 %v1864, 4294901760
    %2386 = vmatmul.mubr.f32.gmra.mrb[0].mxu0 %v2385
    %v2387 = vpop.f32.mrb[0].mxu0
    %v2388 = vadd.f32 %v2307, %v2387
    %v2389 = vpop.f32.mrb[0].mxu0
    %2390 = vmatprep.mubr.f32.mxu0 0.0
    %v2391 = vand.u32 %v1867, 4294901760
    %2392 = vmatmul.mubr.f32.gmra.mrb[0].mxu0 %v2391
    %v2393 = vpop.f32.mrb[0].mxu0
    %v2394 = vadd.f32 %v2313, %v2393
    %v2395 = vpop.f32.mrb[0].mxu0
    %2396 = vdwg.mxu0
    %2398 = vset.pattern.permute.xlu0 0
    %2399 = vperm.xlu0 %2398, %v1861
    %v2400 = vpop.permute.xlu0 %2399
    %2403 = vset.pattern.permute.xlu0 0
    %2404 = vperm.xlu0 %2403, %v1862
    %v2405 = vpop.permute.xlu0 %2404
    %v2407 = vmul.f32 %v2388, %v2400
    %v2408 = vmul.f32 %v2394, %v2405
    %2409 = vst.msk [vmem:[#allocation4] sm:$0xff] %vm646, %v2407
    %2410 = vst.msk [vmem:[#allocation4 + $0x8] sm:$0xff] %vm646, %v2408
    // Predicated region
    $region26: #{tpu_custom_call.1} parent=1 // pred_check
      _
    $region27: #{tpu_custom_call.1} parent=1 // pred_check_branch
      %2412 = sbr.rel (0) target = $region29
    $region28: #{tpu_custom_call.1} parent=1 // pred_region
      %s2414 = ssub.s32 256, 256
      %2415 = vsyncadd [#allocation3], %s2414
      %s2416 = sshll.u32 [#allocation2], 4
      %s2417 = int_to_ptr.vmem [resolvable:$true] %s2416
      %2422 = dma.vmem_to_hbm [thread:$0]  %s2417, 256, %s6, [#allocation3], 128, 128, 8
    $region29: #{tpu_custom_call.1} parent=1 // pred_fallthru
      _
    // Predicated region
    $region30: #{tpu_custom_call.1} parent=1 // pred_check
      _
    $region31: #{tpu_custom_call.1} parent=1 // pred_check_branch
      %2424 = sbr.rel (0) target = $region33
    $region32: #{tpu_custom_call.1} parent=1 // pred_region
      %s2426 = ssub.s32 256, 256
      %2427 = vsyncadd [#allocation5], %s2426
      %s2428 = sshll.u32 [#allocation4], 4
      %s2429 = int_to_ptr.vmem [resolvable:$true] %s2428
      %2434 = dma.vmem_to_hbm [thread:$0]  %s2429, 256, %s7, [#allocation5], 128, 128, 8
    $region33: #{tpu_custom_call.1} parent=1 // pred_fallthru
      _
    // Predicated region
    $region34: #{tpu_custom_call.1} parent=1 // pred_check
      _
    $region35: #{tpu_custom_call.1} parent=1 // pred_check_branch
      %2436 = sbr.rel (0) target = $region37
    $region36: #{tpu_custom_call.1} parent=1 // pred_region
      %2437 = dma.done [#allocation3], 256
    $region37: #{tpu_custom_call.1} parent=1 // pred_fallthru
      _
    // Predicated region
    $region38: #{tpu_custom_call.1} parent=1 // pred_check
      _
    $region39: #{tpu_custom_call.1} parent=1 // pred_check_branch
      %2439 = sbr.rel (0) target = $region41
    $region40: #{tpu_custom_call.1} parent=1 // pred_region
      %2440 = dma.done [#allocation5], 256
    $region41: #{tpu_custom_call.1} parent=1 // pred_fallthru
      _
    %2441 = vsyncpa [#allocation3], 1
    %2442 = vsyncpa [#allocation5], 1

</llo_original>
